<compile_context>
chip_gen: v5e
topology: v5e:2x2
jax: 0.10.0
libtpu: 0.0.40
codegen_flags: <defaults>
</compile_context>

<pallas_src>
import functools

import jax
import jax.numpy as jnp
from jax.experimental import pallas as pl
from jax.experimental.pallas import tpu as pltpu


# ---------------------------------------------------------------------------
# Pass 1: h = x @ W (all heads fused), plus per-node attention halves f1 / f2
# ---------------------------------------------------------------------------
def _proj_kernel(x_ref, w_ref, a1_ref, a2_ref, h_ref, f1_ref, f2_ref, *,
                 nheads, nhid):
    h = jnp.dot(x_ref[...], w_ref[...],
                preferred_element_type=jnp.float32)            # (TM, F_pad)
    f1_cols, f2_cols = [], []
    for hd in range(nheads):
        hh = h[:, hd * nhid:(hd + 1) * nhid]                   # (TM, nhid)
        a1h = a1_ref[hd:hd + 1, :]                             # (1, nhid)
        a2h = a2_ref[hd:hd + 1, :]
        # VPU multiply + small lane reduce instead of a lane-sparse (N,1) matmul
        f1_cols.append(jnp.sum(hh * a1h, axis=1, keepdims=True))
        f2_cols.append(jnp.sum(hh * a2h, axis=1, keepdims=True))
    f1_ref[...] = jnp.concatenate(f1_cols, axis=1)             # (TM, nheads)
    f2_ref[...] = jnp.concatenate(f2_cols, axis=1)             # (TM, nheads)
    h_ref[...] = h.astype(h_ref.dtype)                         # bf16 MXU operand


# ---------------------------------------------------------------------------
# Pass 2: tiled masked attention + aggregation (accumulate over column tiles)
# ---------------------------------------------------------------------------
def _attn_kernel(f1_ref, f2t_ref, adj_ref, h_ref, out_ref, acc_ref, rsum_ref, *,
                 alpha, nheads, nhid, apply_elu):
    j = pl.program_id(1)

    @pl.when(j == 0)
    def _():
        acc_ref[...] = jnp.zeros_like(acc_ref)
        rsum_ref[...] = jnp.zeros_like(rsum_ref)

    adj_t = adj_ref[...].astype(jnp.float32)     # (TM, TN) 0/1 mask (bf16 DMA)
    h_col = h_ref[...]                           # (TN, F_pad) bf16
    f1 = f1_ref[...]                             # (TM, nheads)
    f2 = f2t_ref[...]                            # (nheads, TN) lane-major

    f_pad = acc_ref.shape[1]
    pad = f_pad - nheads * nhid

    acc_cols, rs_cols = [], []
    for hd in range(nheads):
        s = f1[:, hd:hd + 1] + f2[hd:hd + 1, :]              # broadcast add
        lrelu = jnp.where(s > 0, s, alpha * s)
        # clamp keeps a masked-out +inf from becoming 0 * inf = NaN
        e = adj_t * jnp.exp(jnp.minimum(-lrelu, 60.0))       # multiply-mask
        rs_cols.append(jnp.sum(e, axis=1, keepdims=True))
        acc_cols.append(jnp.dot(e.astype(jnp.bfloat16),
                                h_col[:, hd * nhid:(hd + 1) * nhid],
                                preferred_element_type=jnp.float32))
    if pad:
        acc_cols.append(jnp.zeros((acc_ref.shape[0], pad), jnp.float32))
    acc_ref[...] += jnp.concatenate(acc_cols, axis=1)        # one full-width RMW
    rsum_ref[...] += jnp.concatenate(rs_cols, axis=1)

    @pl.when(j == pl.num_programs(1) - 1)
    def _():
        inv = pl.reciprocal(rsum_ref[...] + 1e-16, approx=True)   # (TM, nheads)
        acc = acc_ref[...]
        cols = []
        for hd in range(nheads):
            cols.append(acc[:, hd * nhid:(hd + 1) * nhid] * inv[:, hd:hd + 1])
        if pad:
            cols.append(jnp.zeros((acc.shape[0], pad), jnp.float32))
        hp = jnp.concatenate(cols, axis=1)
        if apply_elu:
            hp = jnp.where(hp > 0.0, hp, jnp.exp(hp) - 1.0)       # ELU
        out_ref[...] = hp.astype(out_ref.dtype)                   # lane-dense store


# ---------------------------------------------------------------------------
# One fused-heads SpGraphAttentionLayer forward (eval mode)
# ---------------------------------------------------------------------------
def sp_gat_layer(x, adj_bf16, W, a1, a2, *, alpha, apply_elu, tm=128, tn=128):
    """x: (N,F_in) f32; adj: (N,N) bf16 0/1; W: (F_in, nheads*nhid);
    a1,a2: (nheads, nhid). Returns (N, nheads*nhid) f32."""
    N, f_in = x.shape
    nheads, nhid = a1.shape
    f_real = nheads * nhid
    f_pad = ((f_real + 127) // 128) * 128      # lane-dense h / out
    tm = min(tm, N)
    tn = min(tn, N)
    assert N % tm == 0 and N % tn == 0, "N must be divisible by the tile sizes"

    W_pad = jnp.pad(W, ((0, 0), (0, f_pad - f_real)))

    cp = pltpu.CompilerParams(dimension_semantics=("parallel",),
                              vmem_limit_bytes=32 * 1024 * 1024)

    h, f1, f2 = pl.pallas_call(
        functools.partial(_proj_kernel, nheads=nheads, nhid=nhid),
        grid=(N // tm,),
        in_specs=[
            pl.BlockSpec((tm, f_in), lambda i: (i, 0)),
            pl.BlockSpec((f_in, f_pad), lambda i: (0, 0)),
            pl.BlockSpec((nheads, nhid), lambda i: (0, 0)),
            pl.BlockSpec((nheads, nhid), lambda i: (0, 0)),
        ],
        out_specs=[
            pl.BlockSpec((tm, f_pad), lambda i: (i, 0)),
            pl.BlockSpec((tm, nheads), lambda i: (i, 0)),
            pl.BlockSpec((tm, nheads), lambda i: (i, 0)),
        ],
        out_shape=[
            jax.ShapeDtypeStruct((N, f_pad), jnp.bfloat16),   # h (MXU operand)
            jax.ShapeDtypeStruct((N, nheads), jnp.float32),   # f1 (row side)
            jax.ShapeDtypeStruct((N, nheads), jnp.float32),   # f2 (col side)
        ],
        compiler_params=cp,
    )(x, W_pad, a1, a2)

    # O(N) one-time transpose so each column tile arrives as a lane-major
    # (nheads, TN) slab -> broadcast-add in-kernel, no XLU work on the N^2 path.
    f2t = f2.T

    out_pad = pl.pallas_call(
        functools.partial(_attn_kernel, alpha=alpha, nheads=nheads, nhid=nhid,
                          apply_elu=apply_elu),
        grid=(N // tm, N // tn),
        in_specs=[
            pl.BlockSpec((tm, nheads), lambda i, j: (i, 0)),   # f1   (row tile)
            pl.BlockSpec((nheads, tn), lambda i, j: (0, j)),   # f2^T (col tile)
            pl.BlockSpec((tm, tn), lambda i, j: (i, j)),       # adj tile (bf16)
            pl.BlockSpec((tn, f_pad), lambda i, j: (j, 0)),    # h    (col tile)
        ],
        out_specs=pl.BlockSpec((tm, f_pad), lambda i, j: (i, 0)),
        out_shape=jax.ShapeDtypeStruct((N, f_pad), jnp.float32),
        scratch_shapes=[
            pltpu.VMEM((tm, f_pad), jnp.float32),    # acc = sum_j e @ h_j
            pltpu.VMEM((tm, nheads), jnp.float32),   # per-head rowsum
        ],
        compiler_params=pltpu.CompilerParams(
            dimension_semantics=("parallel", "arbitrary"),
            vmem_limit_bytes=32 * 1024 * 1024),
    )(f1, f2t, adj_bf16, h)

    return out_pad[:, :f_real]


# ---------------------------------------------------------------------------
# Parameter init (mirrors the PyTorch __init__ shapes, packed per layer)
# ---------------------------------------------------------------------------
def _xavier_normal(key, shape, gain):
    std = gain * jnp.sqrt(2.0 / (shape[0] + shape[1]))
    return std * jax.random.normal(key, shape, dtype=jnp.float32)


def init_spgat_params(key, nfeat, nhid, nclass, nheads):
    Ws, a1s, a2s = [], [], []
    for _ in range(nheads):
        kw, ka, key = jax.random.split(key, 3)
        Ws.append(_xavier_normal(kw, (nfeat, nhid), gain=1.414))
        a = _xavier_normal(ka, (1, 2 * nhid), gain=1.414)
        a1s.append(a[:, :nhid])
        a2s.append(a[:, nhid:])
    kw, ka, kp, key = jax.random.split(key, 4)
    a_out = _xavier_normal(ka, (1, 2 * nhid), gain=1.414)
    return {
        "W1": jnp.concatenate(Ws, axis=1),        # (nfeat, nheads*nhid)
        "a1_1": jnp.concatenate(a1s, axis=0),     # (nheads, nhid)
        "a2_1": jnp.concatenate(a2s, axis=0),     # (nheads, nhid)
        "W2": _xavier_normal(kw, (nhid * nheads, nhid), gain=1.414),
        "a1_2": a_out[:, :nhid],                  # (1, nhid)
        "a2_2": a_out[:, nhid:],                  # (1, nhid)
        # out_proj is defined in SpGAT.__init__ but never used in forward().
        "out_proj_w": 0.05 * jax.random.normal(kp, (nhid, nhid * nheads),
                                               dtype=jnp.float32),
        "out_proj_b": jnp.zeros((nhid,), dtype=jnp.float32),
    }


# ---------------------------------------------------------------------------
# SpGAT forward (eval mode: F.dropout is identity, no log_softmax in reference)
# ---------------------------------------------------------------------------
def spgat_forward(params, x, adj, *, alpha):
    adj_bf16 = adj.astype(jnp.bfloat16)   # 0/1 mask: halves the N^2 HBM stream

    # x = F.dropout(x, p, training=False) -> identity
    h1 = sp_gat_layer(x, adj_bf16, params["W1"], params["a1_1"], params["a2_1"],
                      alpha=alpha, apply_elu=True)        # (N, nheads*nhid)
    # x = F.dropout(x, p, training=False) -> identity
    # F.elu(out_att(x, adj)) with out_att.concat=False == apply_elu=True here.
    out = sp_gat_layer(h1, adj_bf16, params["W2"], params["a1_2"],
                       params["a2_2"], alpha=alpha, apply_elu=True)  # (N, nhid)
    return out


# ---------------------------------------------------------------------------
if __name__ == "__main__":
    N, nfeat, nhid, nclass, nheads = 256, 32, 16, 7, 4
    dropout, alpha = 0.6, 0.2

    key = jax.random.PRNGKey(0)
    kx, kadj, kparams = jax.random.split(key, 3)

    x = jax.random.normal(kx, (N, nfeat), dtype=jnp.float32)
    # random sparse adjacency with self-loops so every row has >= 1 edge
    adj = (jax.random.uniform(kadj, (N, N)) < 0.05).astype(jnp.float32)
    adj = jnp.maximum(adj, jnp.eye(N, dtype=jnp.float32))

    params = init_spgat_params(kparams, nfeat, nhid, nclass, nheads)

    out = spgat_forward(params, x, adj, alpha=alpha)
    out = jax.block_until_ready(out)

    assert out.shape == (N, nhid)
    assert bool(jnp.all(jnp.isfinite(out)))
    print("KERNEL_OK")
</pallas_src>

<mosaic_0001>
module attributes {stable_mosaic.version = 11 : i64} {
  func.func @_proj_kernel(%arg0: i32, %arg1: memref<128x32xf32, #tpu.memory_space<vmem>>, %arg2: memref<32x128xf32, #tpu.memory_space<vmem>>, %arg3: memref<4x16xf32, #tpu.memory_space<vmem>>, %arg4: memref<4x16xf32, #tpu.memory_space<vmem>>, %arg5: memref<128x128xbf16, #tpu.memory_space<vmem>>, %arg6: memref<128x4xf32, #tpu.memory_space<vmem>>, %arg7: memref<128x4xf32, #tpu.memory_space<vmem>>) attributes {dimension_semantics = [#tpu.dimension_semantics<parallel>], iteration_bounds = array<i64: 2>, scalar_prefetch = 0 : i64, scratch_operands = 0 : i64, tpu.core_type = #tpu.core_type<tc>, window_params = [{transform_indices = @transform_0, window_bounds = array<i64: 128, 32>}, {pipeline_mode = #tpu.pipeline_mode<synchronous>, transform_indices = @transform_1, window_bounds = array<i64: 32, 128>}, {pipeline_mode = #tpu.pipeline_mode<synchronous>, transform_indices = @transform_2, window_bounds = array<i64: 4, 16>}, {pipeline_mode = #tpu.pipeline_mode<synchronous>, transform_indices = @transform_3, window_bounds = array<i64: 4, 16>}, {transform_indices = @transform_4, window_bounds = array<i64: 128, 128>}, {transform_indices = @transform_5, window_bounds = array<i64: 128, 4>}, {transform_indices = @transform_6, window_bounds = array<i64: 128, 4>}]} {
    %c0 = arith.constant 0 : index
    %c0_0 = arith.constant 0 : index
    %0 = vector.load %arg1[%c0, %c0_0] : memref<128x32xf32, #tpu.memory_space<vmem>>, vector<128x32xf32>
    %c0_1 = arith.constant 0 : index
    %c0_2 = arith.constant 0 : index
    %1 = vector.load %arg2[%c0_1, %c0_2] : memref<32x128xf32, #tpu.memory_space<vmem>>, vector<32x128xf32>
    %cst = arith.constant dense<0.000000e+00> : vector<128x128xf32>
    %2 = tpu.matmul %0, %1, %cst {dimension_numbers = #tpu.dot_dimension_numbers<[1], [0], [0], [1], [0, 0, 1, 1], [], []>} : vector<128x32xf32>, vector<32x128xf32>, vector<128x128xf32> -> vector<128x128xf32>
    %3 = vector.extract_strided_slice %2 {offsets = [0, 0], sizes = [128, 16], strides = [1, 1]} : vector<128x128xf32> to vector<128x16xf32>
    %c0_3 = arith.constant 0 : index
    %c0_4 = arith.constant 0 : index
    %4 = vector.load %arg3[%c0_3, %c0_4] : memref<4x16xf32, #tpu.memory_space<vmem>>, vector<1x16xf32>
    %c0_5 = arith.constant 0 : index
    %c0_6 = arith.constant 0 : index
    %5 = vector.load %arg4[%c0_5, %c0_6] : memref<4x16xf32, #tpu.memory_space<vmem>>, vector<1x16xf32>
    %6 = vector.broadcast %4 : vector<1x16xf32> to vector<128x16xf32>
    %7 = arith.mulf %3, %6 : vector<128x16xf32>
    %cst_7 = arith.constant dense<0.000000e+00> : vector<128xf32>
    %8 = vector.multi_reduction <add>, %7, %cst_7 [1] : vector<128x16xf32> to vector<128xf32>
    %9 = vector.shape_cast %8 : vector<128xf32> to vector<128x1xf32>
    %10 = vector.broadcast %5 : vector<1x16xf32> to vector<128x16xf32>
    %11 = arith.mulf %3, %10 : vector<128x16xf32>
    %cst_8 = arith.constant dense<0.000000e+00> : vector<128xf32>
    %12 = vector.multi_reduction <add>, %11, %cst_8 [1] : vector<128x16xf32> to vector<128xf32>
    %13 = vector.shape_cast %12 : vector<128xf32> to vector<128x1xf32>
    %14 = vector.extract_strided_slice %2 {offsets = [0, 16], sizes = [128, 16], strides = [1, 1]} : vector<128x128xf32> to vector<128x16xf32>
    %c1 = arith.constant 1 : index
    %c0_9 = arith.constant 0 : index
    %15 = vector.load %arg3[%c1, %c0_9] : memref<4x16xf32, #tpu.memory_space<vmem>>, vector<1x16xf32>
    %c1_10 = arith.constant 1 : index
    %c0_11 = arith.constant 0 : index
    %16 = vector.load %arg4[%c1_10, %c0_11] : memref<4x16xf32, #tpu.memory_space<vmem>>, vector<1x16xf32>
    %17 = vector.broadcast %15 : vector<1x16xf32> to vector<128x16xf32>
    %18 = arith.mulf %14, %17 : vector<128x16xf32>
    %cst_12 = arith.constant dense<0.000000e+00> : vector<128xf32>
    %19 = vector.multi_reduction <add>, %18, %cst_12 [1] : vector<128x16xf32> to vector<128xf32>
    %20 = vector.shape_cast %19 : vector<128xf32> to vector<128x1xf32>
    %21 = vector.broadcast %16 : vector<1x16xf32> to vector<128x16xf32>
    %22 = arith.mulf %14, %21 : vector<128x16xf32>
    %cst_13 = arith.constant dense<0.000000e+00> : vector<128xf32>
    %23 = vector.multi_reduction <add>, %22, %cst_13 [1] : vector<128x16xf32> to vector<128xf32>
    %24 = vector.shape_cast %23 : vector<128xf32> to vector<128x1xf32>
    %25 = vector.extract_strided_slice %2 {offsets = [0, 32], sizes = [128, 16], strides = [1, 1]} : vector<128x128xf32> to vector<128x16xf32>
    %c2 = arith.constant 2 : index
    %c0_14 = arith.constant 0 : index
    %26 = vector.load %arg3[%c2, %c0_14] : memref<4x16xf32, #tpu.memory_space<vmem>>, vector<1x16xf32>
    %c2_15 = arith.constant 2 : index
    %c0_16 = arith.constant 0 : index
    %27 = vector.load %arg4[%c2_15, %c0_16] : memref<4x16xf32, #tpu.memory_space<vmem>>, vector<1x16xf32>
    %28 = vector.broadcast %26 : vector<1x16xf32> to vector<128x16xf32>
    %29 = arith.mulf %25, %28 : vector<128x16xf32>
    %cst_17 = arith.constant dense<0.000000e+00> : vector<128xf32>
    %30 = vector.multi_reduction <add>, %29, %cst_17 [1] : vector<128x16xf32> to vector<128xf32>
    %31 = vector.shape_cast %30 : vector<128xf32> to vector<128x1xf32>
    %32 = vector.broadcast %27 : vector<1x16xf32> to vector<128x16xf32>
    %33 = arith.mulf %25, %32 : vector<128x16xf32>
    %cst_18 = arith.constant dense<0.000000e+00> : vector<128xf32>
    %34 = vector.multi_reduction <add>, %33, %cst_18 [1] : vector<128x16xf32> to vector<128xf32>
    %35 = vector.shape_cast %34 : vector<128xf32> to vector<128x1xf32>
    %36 = vector.extract_strided_slice %2 {offsets = [0, 48], sizes = [128, 16], strides = [1, 1]} : vector<128x128xf32> to vector<128x16xf32>
    %c3 = arith.constant 3 : index
    %c0_19 = arith.constant 0 : index
    %37 = vector.load %arg3[%c3, %c0_19] : memref<4x16xf32, #tpu.memory_space<vmem>>, vector<1x16xf32>
    %c3_20 = arith.constant 3 : index
    %c0_21 = arith.constant 0 : index
    %38 = vector.load %arg4[%c3_20, %c0_21] : memref<4x16xf32, #tpu.memory_space<vmem>>, vector<1x16xf32>
    %39 = vector.broadcast %37 : vector<1x16xf32> to vector<128x16xf32>
    %40 = arith.mulf %36, %39 : vector<128x16xf32>
    %cst_22 = arith.constant dense<0.000000e+00> : vector<128xf32>
    %41 = vector.multi_reduction <add>, %40, %cst_22 [1] : vector<128x16xf32> to vector<128xf32>
    %42 = vector.shape_cast %41 : vector<128xf32> to vector<128x1xf32>
    %43 = vector.broadcast %38 : vector<1x16xf32> to vector<128x16xf32>
    %44 = arith.mulf %36, %43 : vector<128x16xf32>
    %cst_23 = arith.constant dense<0.000000e+00> : vector<128xf32>
    %45 = vector.multi_reduction <add>, %44, %cst_23 [1] : vector<128x16xf32> to vector<128xf32>
    %46 = vector.shape_cast %45 : vector<128xf32> to vector<128x1xf32>
    %47 = tpu.concatenate %9, %20, %31, %42 in 1 : vector<128x1xf32>, vector<128x1xf32>, vector<128x1xf32>, vector<128x1xf32> -> vector<128x4xf32>
    %c0_24 = arith.constant 0 : index
    %c0_25 = arith.constant 0 : index
    %48 = vector.load %arg6[%c0_24, %c0_25] : memref<128x4xf32, #tpu.memory_space<vmem>>, vector<128x4xf32>
    tpu.vector_store %arg6[%c0_24, %c0_25], %47 {strides = array<i32>} : memref<128x4xf32, #tpu.memory_space<vmem>>, vector<128x4xf32>,
    %49 = tpu.concatenate %13, %24, %35, %46 in 1 : vector<128x1xf32>, vector<128x1xf32>, vector<128x1xf32>, vector<128x1xf32> -> vector<128x4xf32>
    %c0_26 = arith.constant 0 : index
    %c0_27 = arith.constant 0 : index
    %50 = vector.load %arg7[%c0_26, %c0_27] : memref<128x4xf32, #tpu.memory_space<vmem>>, vector<128x4xf32>
    tpu.vector_store %arg7[%c0_26, %c0_27], %49 {strides = array<i32>} : memref<128x4xf32, #tpu.memory_space<vmem>>, vector<128x4xf32>,
    %51 = arith.truncf %2 : vector<128x128xf32> to vector<128x128xbf16>
    %c0_28 = arith.constant 0 : index
    %c0_29 = arith.constant 0 : index
    %52 = vector.load %arg5[%c0_28, %c0_29] : memref<128x128xbf16, #tpu.memory_space<vmem>>, vector<128x128xbf16>
    tpu.vector_store %arg5[%c0_28, %c0_29], %51 {strides = array<i32>} : memref<128x128xbf16, #tpu.memory_space<vmem>>, vector<128x128xbf16>,
    return
  }
  func.func @transform_0(%arg0: i32) -> (i32, i32) {
    %c0_i32 = arith.constant 0 : i32
    %c0_i32_0 = arith.constant 0 : i32
    return %arg0, %c0_i32 : i32, i32
  }
  func.func @transform_1(%arg0: i32) -> (i32, i32) {
    %c0_i32 = arith.constant 0 : i32
    %c0_i32_0 = arith.constant 0 : i32
    %c0_i32_1 = arith.constant 0 : i32
    return %c0_i32, %c0_i32_0 : i32, i32
  }
  func.func @transform_2(%arg0: i32) -> (i32, i32) {
    %c0_i32 = arith.constant 0 : i32
    %c0_i32_0 = arith.constant 0 : i32
    %c0_i32_1 = arith.constant 0 : i32
    return %c0_i32, %c0_i32_0 : i32, i32
  }
  func.func @transform_3(%arg0: i32) -> (i32, i32) {
    %c0_i32 = arith.constant 0 : i32
    %c0_i32_0 = arith.constant 0 : i32
    %c0_i32_1 = arith.constant 0 : i32
    return %c0_i32, %c0_i32_0 : i32, i32
  }
  func.func @transform_4(%arg0: i32) -> (i32, i32) {
    %c0_i32 = arith.constant 0 : i32
    %c0_i32_0 = arith.constant 0 : i32
    return %arg0, %c0_i32 : i32, i32
  }
  func.func @transform_5(%arg0: i32) -> (i32, i32) {
    %c0_i32 = arith.constant 0 : i32
    %c0_i32_0 = arith.constant 0 : i32
    return %arg0, %c0_i32 : i32, i32
  }
  func.func @transform_6(%arg0: i32) -> (i32, i32) {
    %c0_i32 = arith.constant 0 : i32
    %c0_i32_0 = arith.constant 0 : i32
    return %arg0, %c0_i32 : i32, i32
  }
}

</mosaic_0001>

<llo_original>
// kernel: tpu_custom_call.1
$region0: #{tpu_custom_call.1}
  #allocation0 [shape = 'u32[]', space=smem, size = 0x4, offset = 0x4, fixed_abs, tag = 'smem constant byte address 0x4 - core index']
  #allocation1 [shape = 'u32[72,128]{1,0:T(1,128)}', space=vmem, size = 0x9000, scoped, tag = 'internal scratch']
  %s0 = inlined_call_operand.vmem [shape: f32[256,32], index: 0, kind: input, shape index: {}]
  %s1 = inlined_call_operand.vmem [shape: f32[32,128], index: 1, kind: input, shape index: {}]
  %s2 = inlined_call_operand.vmem [shape: f32[4,16], index: 2, kind: input, shape index: {}]
  %s3 = inlined_call_operand.vmem [shape: f32[4,16], index: 3, kind: input, shape index: {}]
  %s4 = inlined_call_operand.hbm [shape: bf16[256,128], index: 4, kind: output, shape index: {0}]
  %s5 = inlined_call_operand.vmem [shape: f32[256,4], index: 5, kind: output, shape index: {1}]
  %s6 = inlined_call_operand.vmem [shape: f32[256,4], index: 6, kind: output, shape index: {2}]
  %7 = xla_tuple %s4, %s5, %s6
  %s8 = sld [smem:[#allocation0]]
  $region65: #{tpu_custom_call.1} parent=0
    _
  %s10 = ssub.s32 1, %s8
  %s11 = scalar_select 0, %s10, %s8
  $region1: #{tpu_custom_call.1} parent=0
    #allocation2 [shape = 'u8[65536]{0}', space=vmem, size = 0x10000, scoped, tag = 'output window, operand 0']
    #allocation3 [shape = 's32[2]{0}', space=sflag, size = 0x8, scoped, tag = 'scoped memory for tpu_custom_call.1']
    %12 = vsyncpa [#allocation3], 0
    %s13 = scalar_lea.sflag [#allocation3], 1
    %14 = vsyncpa %s13, 0
    loop: start=0, step=1, limit=4
    $region2: #{tpu_custom_call.1} parent=1 // loop_pre_header
      _
    $region3: #{tpu_custom_call.1} parent=1 // loop_header
      %s16 = sphi 0, %s20
      %p17 = scmp.ge.s32.totalorder %s16, 4
      %s26 = sphi 0, %s28
      %s29 = sphi 0, %s26
      %s30 = sphi 0, %s29
      %s46 = sphi 0, %s30
      %s50 = sphi 0, %s50
      %s52 = sphi 0, %s50
      %s53 = sphi 0, %s52
      %s67 = sphi 0, %s53
      %s71 = sphi 0, %s71
      %s73 = sphi 0, %s71
      %s74 = sphi 0, %s73
      %s88 = sphi 0, %s74
      %s92 = sphi 0, %s92
      %s94 = sphi 0, %s92
      %s95 = sphi 0, %s94
      %s109 = sphi 0, %s95
      %s115 = sphi 0, %s117
      %s118 = sphi 0, %s115
      %s119 = sphi 0, %s118
      %s135 = sphi 0, %s119
      %s141 = sphi 0, %s143
      %s144 = sphi 0, %s141
      %s145 = sphi 0, %s144
      %s161 = sphi 0, %s145
      %s167 = sphi 0, %s169
      %s170 = sphi 0, %s167
      %s171 = sphi 0, %s170
      %s187 = sphi 0, %s171
    $region4: #{tpu_custom_call.1} parent=1 // loop_header_branch
      %19 = sbr.rel (%p17) target = $region8
    $region5: #{tpu_custom_call.1} parent=1 // loop_body
      %s21 = ssub.s32 %s16, 1
      %s22 = ssub.s32 %s16, 2
      %s23 = sadd.s32 %s16, 1
      %s24 = ssub.s32 %s16, %s23
      %p25 = scmp.eq.s32.totalorder %s24, 0
      %s27 = sadd.s32 %s26, 1
      %s28 = scalar_select %p25, %s26, %s27
      %p31 = pneg %p25
      %p32 = scmp.eq.s32.totalorder %s16, 1
      %p33 = por %p31, %p32
      %p34 = scmp.ne.s32.totalorder %s26, %s29
      %p35 = scmp.eq.s32.totalorder %s16, 0
      %p36 = por %p34, %p35
      %p37 = scmp.ne.s32.totalorder %s26, %s29
      %p38 = scmp.eq.s32.totalorder %s21, 1
      %p39 = por %p37, %p38
      %p40 = scmp.ne.s32.totalorder %s29, %s30
      %p41 = scmp.eq.s32.totalorder %s21, 0
      %p42 = por %p40, %p41
      %p43 = scmp.ne.s32.totalorder %s29, %s30
      %p44 = scmp.eq.s32.totalorder %s22, 1
      %p45 = por %p43, %p44
      %p47 = scmp.ne.s32.totalorder %s30, %s46
      %p48 = scmp.eq.s32.totalorder %s22, 0
      %p49 = por %p47, %p48
      %s51 = sadd.s32 %s50, 1
      %p54 = scmp.eq.s32.totalorder %s16, 1
      %p55 = scmp.ne.s32.totalorder %s50, %s52
      %p56 = scmp.eq.s32.totalorder %s16, 0
      %p57 = por %p55, %p56
      %p58 = scmp.ne.s32.totalorder %s50, %s52
      %p59 = scmp.eq.s32.totalorder %s21, 1
      %p60 = por %p58, %p59
      %p61 = scmp.ne.s32.totalorder %s52, %s53
      %p62 = scmp.eq.s32.totalorder %s21, 0
      %p63 = por %p61, %p62
      %p64 = scmp.ne.s32.totalorder %s52, %s53
      %p65 = scmp.eq.s32.totalorder %s22, 1
      %p66 = por %p64, %p65
      %p68 = scmp.ne.s32.totalorder %s53, %s67
      %p69 = scmp.eq.s32.totalorder %s22, 0
      %p70 = por %p68, %p69
      %s72 = sadd.s32 %s71, 1
      %p75 = scmp.eq.s32.totalorder %s16, 1
      %p76 = scmp.ne.s32.totalorder %s71, %s73
      %p77 = scmp.eq.s32.totalorder %s16, 0
      %p78 = por %p76, %p77
      %p79 = scmp.ne.s32.totalorder %s71, %s73
      %p80 = scmp.eq.s32.totalorder %s21, 1
      %p81 = por %p79, %p80
      %p82 = scmp.ne.s32.totalorder %s73, %s74
      %p83 = scmp.eq.s32.totalorder %s21, 0
      %p84 = por %p82, %p83
      %p85 = scmp.ne.s32.totalorder %s73, %s74
      %p86 = scmp.eq.s32.totalorder %s22, 1
      %p87 = por %p85, %p86
      %p89 = scmp.ne.s32.totalorder %s74, %s88
      %p90 = scmp.eq.s32.totalorder %s22, 0
      %p91 = por %p89, %p90
      %s93 = sadd.s32 %s92, 1
      %p96 = scmp.eq.s32.totalorder %s16, 1
      %p97 = scmp.ne.s32.totalorder %s92, %s94
      %p98 = scmp.eq.s32.totalorder %s16, 0
      %p99 = por %p97, %p98
      %p100 = scmp.ne.s32.totalorder %s92, %s94
      %p101 = scmp.eq.s32.totalorder %s21, 1
      %p102 = por %p100, %p101
      %p103 = scmp.ne.s32.totalorder %s94, %s95
      %p104 = scmp.eq.s32.totalorder %s21, 0
      %p105 = por %p103, %p104
      %p106 = scmp.ne.s32.totalorder %s94, %s95
      %p107 = scmp.eq.s32.totalorder %s22, 1
      %p108 = por %p106, %p107
      %p110 = scmp.ne.s32.totalorder %s95, %s109
      %p111 = scmp.eq.s32.totalorder %s22, 0
      %p112 = por %p110, %p111
      %s113 = ssub.s32 %s16, %s23
      %p114 = scmp.eq.s32.totalorder %s113, 0
      %s116 = sadd.s32 %s115, 1
      %s117 = scalar_select %p114, %s115, %s116
      %p120 = pneg %p114
      %p121 = scmp.eq.s32.totalorder %s16, 1
      %p122 = por %p120, %p121
      %p123 = scmp.ne.s32.totalorder %s115, %s118
      %p124 = scmp.eq.s32.totalorder %s16, 0
      %p125 = por %p123, %p124
      %p126 = scmp.ne.s32.totalorder %s115, %s118
      %p127 = scmp.eq.s32.totalorder %s21, 1
      %p128 = por %p126, %p127
      %p129 = scmp.ne.s32.totalorder %s118, %s119
      %p130 = scmp.eq.s32.totalorder %s21, 0
      %p131 = por %p129, %p130
      %p132 = scmp.ne.s32.totalorder %s118, %s119
      %p133 = scmp.eq.s32.totalorder %s22, 1
      %p134 = por %p132, %p133
      %p136 = scmp.ne.s32.totalorder %s119, %s135
      %p137 = scmp.eq.s32.totalorder %s22, 0
      %p138 = por %p136, %p137
      %s139 = ssub.s32 %s16, %s23
      %p140 = scmp.eq.s32.totalorder %s139, 0
      %s142 = sadd.s32 %s141, 1
      %s143 = scalar_select %p140, %s141, %s142
      %p146 = pneg %p140
      %p147 = scmp.eq.s32.totalorder %s16, 1
      %p148 = por %p146, %p147
      %p149 = scmp.ne.s32.totalorder %s141, %s144
      %p150 = scmp.eq.s32.totalorder %s16, 0
      %p151 = por %p149, %p150
      %p152 = scmp.ne.s32.totalorder %s141, %s144
      %p153 = scmp.eq.s32.totalorder %s21, 1
      %p154 = por %p152, %p153
      %p155 = scmp.ne.s32.totalorder %s144, %s145
      %p156 = scmp.eq.s32.totalorder %s21, 0
      %p157 = por %p155, %p156
      %p158 = scmp.ne.s32.totalorder %s144, %s145
      %p159 = scmp.eq.s32.totalorder %s22, 1
      %p160 = por %p158, %p159
      %p162 = scmp.ne.s32.totalorder %s145, %s161
      %p163 = scmp.eq.s32.totalorder %s22, 0
      %p164 = por %p162, %p163
      %s165 = ssub.s32 %s16, %s23
      %p166 = scmp.eq.s32.totalorder %s165, 0
      %s168 = sadd.s32 %s167, 1
      %s169 = scalar_select %p166, %s167, %s168
      %p172 = pneg %p166
      %p173 = scmp.eq.s32.totalorder %s16, 1
      %p174 = por %p172, %p173
      %p175 = scmp.ne.s32.totalorder %s167, %s170
      %p176 = scmp.eq.s32.totalorder %s16, 0
      %p177 = por %p175, %p176
      %p178 = scmp.ne.s32.totalorder %s167, %s170
      %p179 = scmp.eq.s32.totalorder %s21, 1
      %p180 = por %p178, %p179
      %p181 = scmp.ne.s32.totalorder %s170, %s171
      %p182 = scmp.eq.s32.totalorder %s21, 0
      %p183 = por %p181, %p182
      %p184 = scmp.ne.s32.totalorder %s170, %s171
      %p185 = scmp.eq.s32.totalorder %s22, 1
      %p186 = por %p184, %p185
      %p188 = scmp.ne.s32.totalorder %s171, %s187
      %p189 = scmp.eq.s32.totalorder %s22, 0
      %p190 = por %p188, %p189
      %p191 = scmp.le.s32.totalorder 1, %s16
      %p192 = scmp.lt.s32.totalorder %s16, 3
      %p193 = pnand %p191, %p192
      %p194 = pneg %p193
      // Predicated region
      $region9: #{tpu_custom_call.1} parent=5 // pred_check
        _
      $region10: #{tpu_custom_call.1} parent=5 // pred_check_branch
        %196 = sbr.rel (%p193) target = $region12
      $region11: #{tpu_custom_call.1} parent=5 // pred_region
        %s197 = ssub.s32 %s16, 1
        // Predicated region
        $region13: #{tpu_custom_call.1} parent=11 // pred_check
          %p198 = pneg %p63
        $region14: #{tpu_custom_call.1} parent=11 // pred_check_branch
          %200 = sbr.rel (%p198) target = $region16
        $region15: #{tpu_custom_call.1} parent=11 // pred_region
          _
        $region16: #{tpu_custom_call.1} parent=11 // pred_fallthru
          _
        // Predicated region
        $region17: #{tpu_custom_call.1} parent=11 // pred_check
          %p201 = pneg %p84
        $region18: #{tpu_custom_call.1} parent=11 // pred_check_branch
          %203 = sbr.rel (%p201) target = $region20
        $region19: #{tpu_custom_call.1} parent=11 // pred_region
          _
        $region20: #{tpu_custom_call.1} parent=11 // pred_fallthru
          _
        // Predicated region
        $region21: #{tpu_custom_call.1} parent=11 // pred_check
          %p204 = pneg %p105
        $region22: #{tpu_custom_call.1} parent=11 // pred_check_branch
          %206 = sbr.rel (%p204) target = $region24
        $region23: #{tpu_custom_call.1} parent=11 // pred_region
          _
        $region24: #{tpu_custom_call.1} parent=11 // pred_fallthru
          _
      $region12: #{tpu_custom_call.1} parent=5 // pred_fallthru
        _
      %p207 = scmp.lt.s32.totalorder %s16, 2
      // Predicated region
      $region25: #{tpu_custom_call.1} parent=5 // pred_check
        %p208 = pneg %p207
      $region26: #{tpu_custom_call.1} parent=5 // pred_check_branch
        %210 = sbr.rel (%p208) target = $region28
      $region27: #{tpu_custom_call.1} parent=5 // pred_region
        // Predicated region
        $region29: #{tpu_custom_call.1} parent=27 // pred_check
          %p211 = pneg %p36
        $region30: #{tpu_custom_call.1} parent=27 // pred_check_branch
          %213 = sbr.rel (%p211) target = $region32
        $region31: #{tpu_custom_call.1} parent=27 // pred_region
          %s214 = smul.u32 16, %s16
          %p215 = scmp.lt.s32.totalorder %s214, 31
          %s216 = scalar_select %p215, %s214, 31
          %s217 = smul.addr %s216, 8
          %s218 = scalar_lea.vmem %s0, %s217
          %s219 = smul.u32 16, %s16
        $region32: #{tpu_custom_call.1} parent=27 // pred_fallthru
          _
      $region28: #{tpu_custom_call.1} parent=5 // pred_fallthru
        _
      %p220 = scmp.le.s32.totalorder 1, %s16
      %p221 = scmp.lt.s32.totalorder %s16, 3
      %p222 = pnand %p220, %p221
      %p223 = pneg %p222
      // Predicated region
      $region33: #{tpu_custom_call.1} parent=5 // pred_check
        _
      $region34: #{tpu_custom_call.1} parent=5 // pred_check_branch
        %225 = sbr.rel (%p222) target = $region36
      $region35: #{tpu_custom_call.1} parent=5 // pred_region
        %s226 = ssub.s32 %s16, 1
        %s227 = smul.u32 16, %s21
        %p228 = scmp.lt.s32.totalorder %s227, 31
        %s229 = scalar_select %p228, %s227, 31
        %s230 = smul.addr %s229, 8
        %s231 = scalar_lea.vmem %s0, %s230
        %p232 = pneg %p42
        %p233 = pneg %p39
        %p234 = pneg %p63
        %p235 = pneg %p60
        %p236 = pneg %p84
        %p237 = pneg %p81
        %p238 = pneg %p105
        %p239 = pneg %p102
        %p240 = pneg %p131
        %p241 = pneg %p128
        %s242 = sand.u32 %s118, 1
        %s243 = scalar_lea.sflag [#allocation3], %s242
        %s244 = sand.u32 %s118, 1
        %s245 = smul.addr %s244, 64
        %s246 = scalar_lea.vmem [#allocation2], %s245
        %p247 = pneg %p157
        %p248 = pneg %p154
        %s249 = smul.u32 16, %s21
        %p250 = scmp.lt.s32.totalorder %s249, 31
        %s251 = scalar_select %p250, %s249, 31
        %s252 = smul.addr %s251, 8
        %s253 = scalar_lea.vmem %s5, %s252
        %p254 = pneg %p183
        %p255 = pneg %p180
        %s256 = smul.u32 16, %s21
        %p257 = scmp.lt.s32.totalorder %s256, 31
        %s258 = scalar_select %p257, %s256, 31
        %s259 = smul.addr %s258, 8
        %s260 = scalar_lea.vmem %s6, %s259
        %s261 = smul.u32 16, %s21
        %p262 = scmp.lt.s32.totalorder %s261, 31
        %s263 = scalar_select %p262, %s261, 31
        %s264 = smul.addr %s263, 8
        %s265 = scalar_lea.vmem %s0, %s264
        %s266 = smul.u32 16, %s21
        %s267 = smul.u32 16, %s21
        %s268 = smul.u32 16, %s21
        %p269 = scmp.lt.s32.totalorder %s268, 31
        %s270 = scalar_select %p269, %s268, 31
        %s271 = smul.addr %s270, 8
        %s272 = scalar_lea.vmem %s5, %s271
        %s273 = smul.u32 16, %s21
        %s274 = smul.u32 16, %s21
        %p275 = scmp.lt.s32.totalorder %s274, 31
        %s276 = scalar_select %p275, %s274, 31
        %s277 = smul.addr %s276, 8
        %s278 = scalar_lea.vmem %s6, %s277
        %s279 = smul.u32 16, %s21
        %v280 = vld [vmem:[%s265] sm:$0xff]
        %v281 = vld [vmem:[%s265 + $0x8] sm:$0xff]
        %v282 = vld [vmem:[%s265 + $0x10] sm:$0xff]
        %v283 = vld [vmem:[%s265 + $0x18] sm:$0xff]
        %v284 = vld [vmem:[%s265 + $0x20] sm:$0xff]
        %v285 = vld [vmem:[%s265 + $0x28] sm:$0xff]
        %v286 = vld [vmem:[%s265 + $0x30] sm:$0xff]
        %v287 = vld [vmem:[%s265 + $0x38] sm:$0xff]
        %v288 = vld [vmem:[%s265 + $0x40] sm:$0xff]
        %v289 = vld [vmem:[%s265 + $0x48] sm:$0xff]
        %v290 = vld [vmem:[%s265 + $0x50] sm:$0xff]
        %v291 = vld [vmem:[%s265 + $0x58] sm:$0xff]
        %v292 = vld [vmem:[%s265 + $0x60] sm:$0xff]
        %v293 = vld [vmem:[%s265 + $0x68] sm:$0xff]
        %v294 = vld [vmem:[%s265 + $0x70] sm:$0xff]
        %v295 = vld [vmem:[%s265 + $0x78] sm:$0xff]
        %v296 = vld [vmem:[%s1] sm:$0xff]
        %v297 = vld [vmem:[%s1 + $0x8] sm:$0xff]
        %v298 = vld [vmem:[%s1 + $0x10] sm:$0xff]
        %v299 = vld [vmem:[%s1 + $0x18] sm:$0xff]
        %vm300 = vcmask 261120
        %v302 = vsel %vm300, %v280, 0
        %v305 = vsel %vm300, %v281, 0
        %v308 = vsel %vm300, %v282, 0
        %v311 = vsel %vm300, %v283, 0
        %v314 = vsel %vm300, %v284, 0
        %v317 = vsel %vm300, %v285, 0
        %v320 = vsel %vm300, %v286, 0
        %v323 = vsel %vm300, %v287, 0
        %v326 = vsel %vm300, %v288, 0
        %v329 = vsel %vm300, %v289, 0
        %v332 = vsel %vm300, %v290, 0
        %v335 = vsel %vm300, %v291, 0
        %v338 = vsel %vm300, %v292, 0
        %v341 = vsel %vm300, %v293, 0
        %v344 = vsel %vm300, %v294, 0
        %v347 = vsel %vm300, %v295, 0
        %349 = vmatpush.msra.mxu0 0.0
        %350 = vmatpush.msra.mxu0 0.0
        %351 = vmatpush.msra.mxu0 0.0
        %352 = vmatpush.msra.mxu0 0.0
        %353 = vmatpush.msra.mxu0 0.0
        %354 = vmatpush.msra.mxu0 0.0
        %355 = vmatpush.msra.mxu0 0.0
        %356 = vmatpush.msra.mxu0 0.0
        %357 = vmatpush.msra.mxu0 0.0
        %358 = vmatpush.msra.mxu0 0.0
        %359 = vmatpush.msra.mxu0 0.0
        %360 = vmatpush.msra.mxu0 0.0
        %361 = vmatpush.msra.mxu0 %v299
        %362 = vmatpush.msra.mxu0 %v298
        %363 = vmatpush.msra.mxu0 %v297
        %364 = vmatpush.msra.mxu0 %v296
        %365 = vmatmul.f32.gmra.mxu0 %v302
        %v366 = vpop.f32.mrf.mxu0
        %v367 = vadd.f32 0.0, %v366
        %368 = vmatmul.f32.gmra.mxu0 %v305
        %v369 = vpop.f32.mrf.mxu0
        %v370 = vadd.f32 0.0, %v369
        %371 = vmatmul.f32.gmra.mxu0 %v308
        %v372 = vpop.f32.mrf.mxu0
        %v373 = vadd.f32 0.0, %v372
        %374 = vmatmul.f32.gmra.mxu0 %v311
        %v375 = vpop.f32.mrf.mxu0
        %v376 = vadd.f32 0.0, %v375
        %377 = vmatmul.f32.gmra.mxu0 %v314
        %v378 = vpop.f32.mrf.mxu0
        %v379 = vadd.f32 0.0, %v378
        %380 = vmatmul.f32.gmra.mxu0 %v317
        %v381 = vpop.f32.mrf.mxu0
        %v382 = vadd.f32 0.0, %v381
        %383 = vmatmul.f32.gmra.mxu0 %v320
        %v384 = vpop.f32.mrf.mxu0
        %v385 = vadd.f32 0.0, %v384
        %386 = vmatmul.f32.gmra.mxu0 %v323
        %v387 = vpop.f32.mrf.mxu0
        %v388 = vadd.f32 0.0, %v387
        %389 = vmatmul.f32.gmra.mxu0 %v326
        %v390 = vpop.f32.mrf.mxu0
        %v391 = vadd.f32 0.0, %v390
        %392 = vmatmul.f32.gmra.mxu0 %v329
        %v393 = vpop.f32.mrf.mxu0
        %v394 = vadd.f32 0.0, %v393
        %395 = vmatmul.f32.gmra.mxu0 %v332
        %v396 = vpop.f32.mrf.mxu0
        %v397 = vadd.f32 0.0, %v396
        %398 = vmatmul.f32.gmra.mxu0 %v335
        %v399 = vpop.f32.mrf.mxu0
        %v400 = vadd.f32 0.0, %v399
        %401 = vmatmul.f32.gmra.mxu0 %v338
        %v402 = vpop.f32.mrf.mxu0
        %v403 = vadd.f32 0.0, %v402
        %404 = vmatmul.f32.gmra.mxu0 %v341
        %v405 = vpop.f32.mrf.mxu0
        %v406 = vadd.f32 0.0, %v405
        %407 = vmatmul.f32.gmra.mxu0 %v344
        %v408 = vpop.f32.mrf.mxu0
        %v409 = vadd.f32 0.0, %v408
        %410 = vmatmul.f32.gmra.mxu0 %v347
        %v411 = vpop.f32.mrf.mxu0
        %v412 = vadd.f32 0.0, %v411
        %413 = vdwg.mxu0
        %v414 = vld [vmem:[%s2] sm:$0x1]
        %v415 = vld [vmem:[%s3] sm:$0x1]
        %v416 = vperm.slane %v414, 0
        %v417 = vmul.f32 %v367, %v416
        %v418 = vmul.f32 %v370, %v416
        %v419 = vmul.f32 %v373, %v416
        %v420 = vmul.f32 %v376, %v416
        %v421 = vmul.f32 %v379, %v416
        %v422 = vmul.f32 %v382, %v416
        %v423 = vmul.f32 %v385, %v416
        %v424 = vmul.f32 %v388, %v416
        %v425 = vmul.f32 %v391, %v416
        %v426 = vmul.f32 %v394, %v416
        %v427 = vmul.f32 %v397, %v416
        %v428 = vmul.f32 %v400, %v416
        %v429 = vmul.f32 %v403, %v416
        %v430 = vmul.f32 %v406, %v416
        %v431 = vmul.f32 %v409, %v416
        %v432 = vmul.f32 %v412, %v416
        %vm433 = vcmask 130048
        %v434 = vsel %vm433, %v417, 0.0
        %435 = vadd.xlane.f32.xlu0 %v434
        %v436 = vpop.xlane.xlu0 %435
        %v437 = vsel %vm433, %v418, 0.0
        %438 = vadd.xlane.f32.xlu0 %v437
        %v439 = vpop.xlane.xlu0 %438
        %v440 = vsel %vm433, %v419, 0.0
        %441 = vadd.xlane.f32.xlu0 %v440
        %v442 = vpop.xlane.xlu0 %441
        %v443 = vsel %vm433, %v420, 0.0
        %444 = vadd.xlane.f32.xlu0 %v443
        %v445 = vpop.xlane.xlu0 %444
        %v446 = vsel %vm433, %v421, 0.0
        %447 = vadd.xlane.f32.xlu0 %v446
        %v448 = vpop.xlane.xlu0 %447
        %v449 = vsel %vm433, %v422, 0.0
        %450 = vadd.xlane.f32.xlu0 %v449
        %v451 = vpop.xlane.xlu0 %450
        %v452 = vsel %vm433, %v423, 0.0
        %453 = vadd.xlane.f32.xlu0 %v452
        %v454 = vpop.xlane.xlu0 %453
        %v455 = vsel %vm433, %v424, 0.0
        %456 = vadd.xlane.f32.xlu0 %v455
        %v457 = vpop.xlane.xlu0 %456
        %v458 = vsel %vm433, %v425, 0.0
        %459 = vadd.xlane.f32.xlu0 %v458
        %v460 = vpop.xlane.xlu0 %459
        %v461 = vsel %vm433, %v426, 0.0
        %462 = vadd.xlane.f32.xlu0 %v461
        %v463 = vpop.xlane.xlu0 %462
        %v464 = vsel %vm433, %v427, 0.0
        %465 = vadd.xlane.f32.xlu0 %v464
        %v466 = vpop.xlane.xlu0 %465
        %v467 = vsel %vm433, %v428, 0.0
        %468 = vadd.xlane.f32.xlu0 %v467
        %v469 = vpop.xlane.xlu0 %468
        %v470 = vsel %vm433, %v429, 0.0
        %471 = vadd.xlane.f32.xlu0 %v470
        %v472 = vpop.xlane.xlu0 %471
        %v473 = vsel %vm433, %v430, 0.0
        %474 = vadd.xlane.f32.xlu0 %v473
        %v475 = vpop.xlane.xlu0 %474
        %v476 = vsel %vm433, %v431, 0.0
        %477 = vadd.xlane.f32.xlu0 %v476
        %v478 = vpop.xlane.xlu0 %477
        %v479 = vsel %vm433, %v432, 0.0
        %480 = vadd.xlane.f32.xlu0 %v479
        %v481 = vpop.xlane.xlu0 %480
        %v482 = vperm.slane %v415, 0
        %v483 = vmul.f32 %v367, %v482
        %v484 = vmul.f32 %v370, %v482
        %v485 = vmul.f32 %v373, %v482
        %v486 = vmul.f32 %v376, %v482
        %v487 = vmul.f32 %v379, %v482
        %v488 = vmul.f32 %v382, %v482
        %v489 = vmul.f32 %v385, %v482
        %v490 = vmul.f32 %v388, %v482
        %v491 = vmul.f32 %v391, %v482
        %v492 = vmul.f32 %v394, %v482
        %v493 = vmul.f32 %v397, %v482
        %v494 = vmul.f32 %v400, %v482
        %v495 = vmul.f32 %v403, %v482
        %v496 = vmul.f32 %v406, %v482
        %v497 = vmul.f32 %v409, %v482
        %v498 = vmul.f32 %v412, %v482
        %v499 = vsel %vm433, %v483, 0.0
        %500 = vadd.xlane.f32.xlu0 %v499
        %v501 = vpop.xlane.xlu0 %500
        %v502 = vsel %vm433, %v484, 0.0
        %503 = vadd.xlane.f32.xlu0 %v502
        %v504 = vpop.xlane.xlu0 %503
        %v505 = vsel %vm433, %v485, 0.0
        %506 = vadd.xlane.f32.xlu0 %v505
        %v507 = vpop.xlane.xlu0 %506
        %v508 = vsel %vm433, %v486, 0.0
        %509 = vadd.xlane.f32.xlu0 %v508
        %v510 = vpop.xlane.xlu0 %509
        %v511 = vsel %vm433, %v487, 0.0
        %512 = vadd.xlane.f32.xlu0 %v511
        %v513 = vpop.xlane.xlu0 %512
        %v514 = vsel %vm433, %v488, 0.0
        %515 = vadd.xlane.f32.xlu0 %v514
        %v516 = vpop.xlane.xlu0 %515
        %v517 = vsel %vm433, %v489, 0.0
        %518 = vadd.xlane.f32.xlu0 %v517
        %v519 = vpop.xlane.xlu0 %518
        %v520 = vsel %vm433, %v490, 0.0
        %521 = vadd.xlane.f32.xlu0 %v520
        %v522 = vpop.xlane.xlu0 %521
        %v523 = vsel %vm433, %v491, 0.0
        %524 = vadd.xlane.f32.xlu0 %v523
        %v525 = vpop.xlane.xlu0 %524
        %v526 = vsel %vm433, %v492, 0.0
        %527 = vadd.xlane.f32.xlu0 %v526
        %v528 = vpop.xlane.xlu0 %527
        %v529 = vsel %vm433, %v493, 0.0
        %530 = vadd.xlane.f32.xlu0 %v529
        %v531 = vpop.xlane.xlu0 %530
        %v532 = vsel %vm433, %v494, 0.0
        %533 = vadd.xlane.f32.xlu0 %v532
        %v534 = vpop.xlane.xlu0 %533
        %v535 = vsel %vm433, %v495, 0.0
        %536 = vadd.xlane.f32.xlu0 %v535
        %v537 = vpop.xlane.xlu0 %536
        %v538 = vsel %vm433, %v496, 0.0
        %539 = vadd.xlane.f32.xlu0 %v538
        %v540 = vpop.xlane.xlu0 %539
        %v541 = vsel %vm433, %v497, 0.0
        %542 = vadd.xlane.f32.xlu0 %v541
        %v543 = vpop.xlane.xlu0 %542
        %v544 = vsel %vm433, %v498, 0.0
        %545 = vadd.xlane.f32.xlu0 %v544
        %v546 = vpop.xlane.xlu0 %545
        %v547 = vld [vmem:[%s2 + $0x1] sm:$0x1]
        %v548 = vld [vmem:[%s3 + $0x1] sm:$0x1]
        %v549 = vperm.slane %v547, 0
        %551 = vrot.lane.b32.xlu0 %v549, 16
        %v552 = vpop.permute.xlu0 %551
        %v554 = vmul.f32 %v367, %v552
        %v555 = vmul.f32 %v370, %v552
        %v556 = vmul.f32 %v373, %v552
        %v557 = vmul.f32 %v376, %v552
        %v558 = vmul.f32 %v379, %v552
        %v559 = vmul.f32 %v382, %v552
        %v560 = vmul.f32 %v385, %v552
        %v561 = vmul.f32 %v388, %v552
        %v562 = vmul.f32 %v391, %v552
        %v563 = vmul.f32 %v394, %v552
        %v564 = vmul.f32 %v397, %v552
        %v565 = vmul.f32 %v400, %v552
        %v566 = vmul.f32 %v403, %v552
        %v567 = vmul.f32 %v406, %v552
        %v568 = vmul.f32 %v409, %v552
        %v569 = vmul.f32 %v412, %v552
        %586 = vrot.lane.b32.xlu0 %v554, 112
        %v587 = vpop.permute.xlu0 %586
        %588 = vrot.lane.b32.xlu0 %v555, 112
        %v589 = vpop.permute.xlu0 %588
        %590 = vrot.lane.b32.xlu0 %v556, 112
        %v591 = vpop.permute.xlu0 %590
        %592 = vrot.lane.b32.xlu0 %v557, 112
        %v593 = vpop.permute.xlu0 %592
        %594 = vrot.lane.b32.xlu0 %v558, 112
        %v595 = vpop.permute.xlu0 %594
        %596 = vrot.lane.b32.xlu0 %v559, 112
        %v597 = vpop.permute.xlu0 %596
        %598 = vrot.lane.b32.xlu0 %v560, 112
        %v599 = vpop.permute.xlu0 %598
        %600 = vrot.lane.b32.xlu0 %v561, 112
        %v601 = vpop.permute.xlu0 %600
        %602 = vrot.lane.b32.xlu0 %v562, 112
        %v603 = vpop.permute.xlu0 %602
        %604 = vrot.lane.b32.xlu0 %v563, 112
        %v605 = vpop.permute.xlu0 %604
        %606 = vrot.lane.b32.xlu0 %v564, 112
        %v607 = vpop.permute.xlu0 %606
        %608 = vrot.lane.b32.xlu0 %v565, 112
        %v609 = vpop.permute.xlu0 %608
        %610 = vrot.lane.b32.xlu0 %v566, 112
        %v611 = vpop.permute.xlu0 %610
        %612 = vrot.lane.b32.xlu0 %v567, 112
        %v613 = vpop.permute.xlu0 %612
        %614 = vrot.lane.b32.xlu0 %v568, 112
        %v615 = vpop.permute.xlu0 %614
        %616 = vrot.lane.b32.xlu0 %v569, 112
        %v617 = vpop.permute.xlu0 %616
        %v634 = vsel %vm433, %v587, 0.0
        %635 = vadd.xlane.f32.xlu0 %v634
        %v636 = vpop.xlane.xlu0 %635
        %v637 = vsel %vm433, %v589, 0.0
        %638 = vadd.xlane.f32.xlu0 %v637
        %v639 = vpop.xlane.xlu0 %638
        %v640 = vsel %vm433, %v591, 0.0
        %641 = vadd.xlane.f32.xlu0 %v640
        %v642 = vpop.xlane.xlu0 %641
        %v643 = vsel %vm433, %v593, 0.0
        %644 = vadd.xlane.f32.xlu0 %v643
        %v645 = vpop.xlane.xlu0 %644
        %v646 = vsel %vm433, %v595, 0.0
        %647 = vadd.xlane.f32.xlu0 %v646
        %v648 = vpop.xlane.xlu0 %647
        %v649 = vsel %vm433, %v597, 0.0
        %650 = vadd.xlane.f32.xlu0 %v649
        %v651 = vpop.xlane.xlu0 %650
        %v652 = vsel %vm433, %v599, 0.0
        %653 = vadd.xlane.f32.xlu0 %v652
        %v654 = vpop.xlane.xlu0 %653
        %v655 = vsel %vm433, %v601, 0.0
        %656 = vadd.xlane.f32.xlu0 %v655
        %v657 = vpop.xlane.xlu0 %656
        %v658 = vsel %vm433, %v603, 0.0
        %659 = vadd.xlane.f32.xlu0 %v658
        %v660 = vpop.xlane.xlu0 %659
        %v661 = vsel %vm433, %v605, 0.0
        %662 = vadd.xlane.f32.xlu0 %v661
        %v663 = vpop.xlane.xlu0 %662
        %v664 = vsel %vm433, %v607, 0.0
        %665 = vadd.xlane.f32.xlu0 %v664
        %v666 = vpop.xlane.xlu0 %665
        %v667 = vsel %vm433, %v609, 0.0
        %668 = vadd.xlane.f32.xlu0 %v667
        %v669 = vpop.xlane.xlu0 %668
        %v670 = vsel %vm433, %v611, 0.0
        %671 = vadd.xlane.f32.xlu0 %v670
        %v672 = vpop.xlane.xlu0 %671
        %v673 = vsel %vm433, %v613, 0.0
        %674 = vadd.xlane.f32.xlu0 %v673
        %v675 = vpop.xlane.xlu0 %674
        %v676 = vsel %vm433, %v615, 0.0
        %677 = vadd.xlane.f32.xlu0 %v676
        %v678 = vpop.xlane.xlu0 %677
        %v679 = vsel %vm433, %v617, 0.0
        %680 = vadd.xlane.f32.xlu0 %v679
        %v681 = vpop.xlane.xlu0 %680
        %v682 = vperm.slane %v548, 0
        %684 = vrot.lane.b32.xlu0 %v682, 16
        %v685 = vpop.permute.xlu0 %684
        %v687 = vmul.f32 %v367, %v685
        %v688 = vmul.f32 %v370, %v685
        %v689 = vmul.f32 %v373, %v685
        %v690 = vmul.f32 %v376, %v685
        %v691 = vmul.f32 %v379, %v685
        %v692 = vmul.f32 %v382, %v685
        %v693 = vmul.f32 %v385, %v685
        %v694 = vmul.f32 %v388, %v685
        %v695 = vmul.f32 %v391, %v685
        %v696 = vmul.f32 %v394, %v685
        %v697 = vmul.f32 %v397, %v685
        %v698 = vmul.f32 %v400, %v685
        %v699 = vmul.f32 %v403, %v685
        %v700 = vmul.f32 %v406, %v685
        %v701 = vmul.f32 %v409, %v685
        %v702 = vmul.f32 %v412, %v685
        %719 = vrot.lane.b32.xlu0 %v687, 112
        %v720 = vpop.permute.xlu0 %719
        %721 = vrot.lane.b32.xlu0 %v688, 112
        %v722 = vpop.permute.xlu0 %721
        %723 = vrot.lane.b32.xlu0 %v689, 112
        %v724 = vpop.permute.xlu0 %723
        %725 = vrot.lane.b32.xlu0 %v690, 112
        %v726 = vpop.permute.xlu0 %725
        %727 = vrot.lane.b32.xlu0 %v691, 112
        %v728 = vpop.permute.xlu0 %727
        %729 = vrot.lane.b32.xlu0 %v692, 112
        %v730 = vpop.permute.xlu0 %729
        %731 = vrot.lane.b32.xlu0 %v693, 112
        %v732 = vpop.permute.xlu0 %731
        %733 = vrot.lane.b32.xlu0 %v694, 112
        %v734 = vpop.permute.xlu0 %733
        %735 = vrot.lane.b32.xlu0 %v695, 112
        %v736 = vpop.permute.xlu0 %735
        %737 = vrot.lane.b32.xlu0 %v696, 112
        %v738 = vpop.permute.xlu0 %737
        %739 = vrot.lane.b32.xlu0 %v697, 112
        %v740 = vpop.permute.xlu0 %739
        %741 = vrot.lane.b32.xlu0 %v698, 112
        %v742 = vpop.permute.xlu0 %741
        %743 = vrot.lane.b32.xlu0 %v699, 112
        %v744 = vpop.permute.xlu0 %743
        %745 = vrot.lane.b32.xlu0 %v700, 112
        %v746 = vpop.permute.xlu0 %745
        %747 = vrot.lane.b32.xlu0 %v701, 112
        %v748 = vpop.permute.xlu0 %747
        %749 = vrot.lane.b32.xlu0 %v702, 112
        %v750 = vpop.permute.xlu0 %749
        %v767 = vsel %vm433, %v720, 0.0
        %768 = vadd.xlane.f32.xlu0 %v767
        %v769 = vpop.xlane.xlu0 %768
        %v770 = vsel %vm433, %v722, 0.0
        %771 = vadd.xlane.f32.xlu0 %v770
        %v772 = vpop.xlane.xlu0 %771
        %v773 = vsel %vm433, %v724, 0.0
        %774 = vadd.xlane.f32.xlu0 %v773
        %v775 = vpop.xlane.xlu0 %774
        %v776 = vsel %vm433, %v726, 0.0
        %777 = vadd.xlane.f32.xlu0 %v776
        %v778 = vpop.xlane.xlu0 %777
        %v779 = vsel %vm433, %v728, 0.0
        %780 = vadd.xlane.f32.xlu0 %v779
        %v781 = vpop.xlane.xlu0 %780
        %v782 = vsel %vm433, %v730, 0.0
        %783 = vadd.xlane.f32.xlu0 %v782
        %v784 = vpop.xlane.xlu0 %783
        %v785 = vsel %vm433, %v732, 0.0
        %786 = vadd.xlane.f32.xlu0 %v785
        %v787 = vpop.xlane.xlu0 %786
        %v788 = vsel %vm433, %v734, 0.0
        %789 = vadd.xlane.f32.xlu0 %v788
        %v790 = vpop.xlane.xlu0 %789
        %v791 = vsel %vm433, %v736, 0.0
        %792 = vadd.xlane.f32.xlu0 %v791
        %v793 = vpop.xlane.xlu0 %792
        %v794 = vsel %vm433, %v738, 0.0
        %795 = vadd.xlane.f32.xlu0 %v794
        %v796 = vpop.xlane.xlu0 %795
        %v797 = vsel %vm433, %v740, 0.0
        %798 = vadd.xlane.f32.xlu0 %v797
        %v799 = vpop.xlane.xlu0 %798
        %v800 = vsel %vm433, %v742, 0.0
        %801 = vadd.xlane.f32.xlu0 %v800
        %v802 = vpop.xlane.xlu0 %801
        %v803 = vsel %vm433, %v744, 0.0
        %804 = vadd.xlane.f32.xlu0 %v803
        %v805 = vpop.xlane.xlu0 %804
        %v806 = vsel %vm433, %v746, 0.0
        %807 = vadd.xlane.f32.xlu0 %v806
        %v808 = vpop.xlane.xlu0 %807
        %v809 = vsel %vm433, %v748, 0.0
        %810 = vadd.xlane.f32.xlu0 %v809
        %v811 = vpop.xlane.xlu0 %810
        %v812 = vsel %vm433, %v750, 0.0
        %813 = vadd.xlane.f32.xlu0 %v812
        %v814 = vpop.xlane.xlu0 %813
        %v815 = vld [vmem:[%s2 + $0x2] sm:$0x1]
        %v816 = vld [vmem:[%s3 + $0x2] sm:$0x1]
        %v817 = vperm.slane %v815, 0
        %819 = vrot.lane.b32.xlu0 %v817, 32
        %v820 = vpop.permute.xlu0 %819
        %v822 = vmul.f32 %v367, %v820
        %v823 = vmul.f32 %v370, %v820
        %v824 = vmul.f32 %v373, %v820
        %v825 = vmul.f32 %v376, %v820
        %v826 = vmul.f32 %v379, %v820
        %v827 = vmul.f32 %v382, %v820
        %v828 = vmul.f32 %v385, %v820
        %v829 = vmul.f32 %v388, %v820
        %v830 = vmul.f32 %v391, %v820
        %v831 = vmul.f32 %v394, %v820
        %v832 = vmul.f32 %v397, %v820
        %v833 = vmul.f32 %v400, %v820
        %v834 = vmul.f32 %v403, %v820
        %v835 = vmul.f32 %v406, %v820
        %v836 = vmul.f32 %v409, %v820
        %v837 = vmul.f32 %v412, %v820
        %854 = vrot.lane.b32.xlu0 %v822, 96
        %v855 = vpop.permute.xlu0 %854
        %856 = vrot.lane.b32.xlu0 %v823, 96
        %v857 = vpop.permute.xlu0 %856
        %858 = vrot.lane.b32.xlu0 %v824, 96
        %v859 = vpop.permute.xlu0 %858
        %860 = vrot.lane.b32.xlu0 %v825, 96
        %v861 = vpop.permute.xlu0 %860
        %862 = vrot.lane.b32.xlu0 %v826, 96
        %v863 = vpop.permute.xlu0 %862
        %864 = vrot.lane.b32.xlu0 %v827, 96
        %v865 = vpop.permute.xlu0 %864
        %866 = vrot.lane.b32.xlu0 %v828, 96
        %v867 = vpop.permute.xlu0 %866
        %868 = vrot.lane.b32.xlu0 %v829, 96
        %v869 = vpop.permute.xlu0 %868
        %870 = vrot.lane.b32.xlu0 %v830, 96
        %v871 = vpop.permute.xlu0 %870
        %872 = vrot.lane.b32.xlu0 %v831, 96
        %v873 = vpop.permute.xlu0 %872
        %874 = vrot.lane.b32.xlu0 %v832, 96
        %v875 = vpop.permute.xlu0 %874
        %876 = vrot.lane.b32.xlu0 %v833, 96
        %v877 = vpop.permute.xlu0 %876
        %878 = vrot.lane.b32.xlu0 %v834, 96
        %v879 = vpop.permute.xlu0 %878
        %880 = vrot.lane.b32.xlu0 %v835, 96
        %v881 = vpop.permute.xlu0 %880
        %882 = vrot.lane.b32.xlu0 %v836, 96
        %v883 = vpop.permute.xlu0 %882
        %884 = vrot.lane.b32.xlu0 %v837, 96
        %v885 = vpop.permute.xlu0 %884
        %v902 = vsel %vm433, %v855, 0.0
        %903 = vadd.xlane.f32.xlu0 %v902
        %v904 = vpop.xlane.xlu0 %903
        %v905 = vsel %vm433, %v857, 0.0
        %906 = vadd.xlane.f32.xlu0 %v905
        %v907 = vpop.xlane.xlu0 %906
        %v908 = vsel %vm433, %v859, 0.0
        %909 = vadd.xlane.f32.xlu0 %v908
        %v910 = vpop.xlane.xlu0 %909
        %v911 = vsel %vm433, %v861, 0.0
        %912 = vadd.xlane.f32.xlu0 %v911
        %v913 = vpop.xlane.xlu0 %912
        %v914 = vsel %vm433, %v863, 0.0
        %915 = vadd.xlane.f32.xlu0 %v914
        %v916 = vpop.xlane.xlu0 %915
        %v917 = vsel %vm433, %v865, 0.0
        %918 = vadd.xlane.f32.xlu0 %v917
        %v919 = vpop.xlane.xlu0 %918
        %v920 = vsel %vm433, %v867, 0.0
        %921 = vadd.xlane.f32.xlu0 %v920
        %v922 = vpop.xlane.xlu0 %921
        %v923 = vsel %vm433, %v869, 0.0
        %924 = vadd.xlane.f32.xlu0 %v923
        %v925 = vpop.xlane.xlu0 %924
        %v926 = vsel %vm433, %v871, 0.0
        %927 = vadd.xlane.f32.xlu0 %v926
        %v928 = vpop.xlane.xlu0 %927
        %v929 = vsel %vm433, %v873, 0.0
        %930 = vadd.xlane.f32.xlu0 %v929
        %v931 = vpop.xlane.xlu0 %930
        %v932 = vsel %vm433, %v875, 0.0
        %933 = vadd.xlane.f32.xlu0 %v932
        %v934 = vpop.xlane.xlu0 %933
        %v935 = vsel %vm433, %v877, 0.0
        %936 = vadd.xlane.f32.xlu0 %v935
        %v937 = vpop.xlane.xlu0 %936
        %v938 = vsel %vm433, %v879, 0.0
        %939 = vadd.xlane.f32.xlu0 %v938
        %v940 = vpop.xlane.xlu0 %939
        %v941 = vsel %vm433, %v881, 0.0
        %942 = vadd.xlane.f32.xlu0 %v941
        %v943 = vpop.xlane.xlu0 %942
        %v944 = vsel %vm433, %v883, 0.0
        %945 = vadd.xlane.f32.xlu0 %v944
        %v946 = vpop.xlane.xlu0 %945
        %v947 = vsel %vm433, %v885, 0.0
        %948 = vadd.xlane.f32.xlu0 %v947
        %v949 = vpop.xlane.xlu0 %948
        %v950 = vperm.slane %v816, 0
        %952 = vrot.lane.b32.xlu0 %v950, 32
        %v953 = vpop.permute.xlu0 %952
        %v955 = vmul.f32 %v367, %v953
        %v956 = vmul.f32 %v370, %v953
        %v957 = vmul.f32 %v373, %v953
        %v958 = vmul.f32 %v376, %v953
        %v959 = vmul.f32 %v379, %v953
        %v960 = vmul.f32 %v382, %v953
        %v961 = vmul.f32 %v385, %v953
        %v962 = vmul.f32 %v388, %v953
        %v963 = vmul.f32 %v391, %v953
        %v964 = vmul.f32 %v394, %v953
        %v965 = vmul.f32 %v397, %v953
        %v966 = vmul.f32 %v400, %v953
        %v967 = vmul.f32 %v403, %v953
        %v968 = vmul.f32 %v406, %v953
        %v969 = vmul.f32 %v409, %v953
        %v970 = vmul.f32 %v412, %v953
        %987 = vrot.lane.b32.xlu0 %v955, 96
        %v988 = vpop.permute.xlu0 %987
        %989 = vrot.lane.b32.xlu0 %v956, 96
        %v990 = vpop.permute.xlu0 %989
        %991 = vrot.lane.b32.xlu0 %v957, 96
        %v992 = vpop.permute.xlu0 %991
        %993 = vrot.lane.b32.xlu0 %v958, 96
        %v994 = vpop.permute.xlu0 %993
        %995 = vrot.lane.b32.xlu0 %v959, 96
        %v996 = vpop.permute.xlu0 %995
        %997 = vrot.lane.b32.xlu0 %v960, 96
        %v998 = vpop.permute.xlu0 %997
        %999 = vrot.lane.b32.xlu0 %v961, 96
        %v1000 = vpop.permute.xlu0 %999
        %1001 = vrot.lane.b32.xlu0 %v962, 96
        %v1002 = vpop.permute.xlu0 %1001
        %1003 = vrot.lane.b32.xlu0 %v963, 96
        %v1004 = vpop.permute.xlu0 %1003
        %1005 = vrot.lane.b32.xlu0 %v964, 96
        %v1006 = vpop.permute.xlu0 %1005
        %1007 = vrot.lane.b32.xlu0 %v965, 96
        %v1008 = vpop.permute.xlu0 %1007
        %1009 = vrot.lane.b32.xlu0 %v966, 96
        %v1010 = vpop.permute.xlu0 %1009
        %1011 = vrot.lane.b32.xlu0 %v967, 96
        %v1012 = vpop.permute.xlu0 %1011
        %1013 = vrot.lane.b32.xlu0 %v968, 96
        %v1014 = vpop.permute.xlu0 %1013
        %1015 = vrot.lane.b32.xlu0 %v969, 96
        %v1016 = vpop.permute.xlu0 %1015
        %1017 = vrot.lane.b32.xlu0 %v970, 96
        %v1018 = vpop.permute.xlu0 %1017
        %v1035 = vsel %vm433, %v988, 0.0
        %1036 = vadd.xlane.f32.xlu0 %v1035
        %v1037 = vpop.xlane.xlu0 %1036
        %v1038 = vsel %vm433, %v990, 0.0
        %1039 = vadd.xlane.f32.xlu0 %v1038
        %v1040 = vpop.xlane.xlu0 %1039
        %v1041 = vsel %vm433, %v992, 0.0
        %1042 = vadd.xlane.f32.xlu0 %v1041
        %v1043 = vpop.xlane.xlu0 %1042
        %v1044 = vsel %vm433, %v994, 0.0
        %1045 = vadd.xlane.f32.xlu0 %v1044
        %v1046 = vpop.xlane.xlu0 %1045
        %v1047 = vsel %vm433, %v996, 0.0
        %1048 = vadd.xlane.f32.xlu0 %v1047
        %v1049 = vpop.xlane.xlu0 %1048
        %v1050 = vsel %vm433, %v998, 0.0
        %1051 = vadd.xlane.f32.xlu0 %v1050
        %v1052 = vpop.xlane.xlu0 %1051
        %v1053 = vsel %vm433, %v1000, 0.0
        %1054 = vadd.xlane.f32.xlu0 %v1053
        %v1055 = vpop.xlane.xlu0 %1054
        %v1056 = vsel %vm433, %v1002, 0.0
        %1057 = vadd.xlane.f32.xlu0 %v1056
        %v1058 = vpop.xlane.xlu0 %1057
        %v1059 = vsel %vm433, %v1004, 0.0
        %1060 = vadd.xlane.f32.xlu0 %v1059
        %v1061 = vpop.xlane.xlu0 %1060
        %v1062 = vsel %vm433, %v1006, 0.0
        %1063 = vadd.xlane.f32.xlu0 %v1062
        %v1064 = vpop.xlane.xlu0 %1063
        %v1065 = vsel %vm433, %v1008, 0.0
        %1066 = vadd.xlane.f32.xlu0 %v1065
        %v1067 = vpop.xlane.xlu0 %1066
        %v1068 = vsel %vm433, %v1010, 0.0
        %1069 = vadd.xlane.f32.xlu0 %v1068
        %v1070 = vpop.xlane.xlu0 %1069
        %v1071 = vsel %vm433, %v1012, 0.0
        %1072 = vadd.xlane.f32.xlu0 %v1071
        %v1073 = vpop.xlane.xlu0 %1072
        %v1074 = vsel %vm433, %v1014, 0.0
        %1075 = vadd.xlane.f32.xlu0 %v1074
        %v1076 = vpop.xlane.xlu0 %1075
        %v1077 = vsel %vm433, %v1016, 0.0
        %1078 = vadd.xlane.f32.xlu0 %v1077
        %v1079 = vpop.xlane.xlu0 %1078
        %v1080 = vsel %vm433, %v1018, 0.0
        %1081 = vadd.xlane.f32.xlu0 %v1080
        %v1082 = vpop.xlane.xlu0 %1081
        %v1083 = vld [vmem:[%s2 + $0x3] sm:$0x1]
        %v1084 = vld [vmem:[%s3 + $0x3] sm:$0x1]
        %v1085 = vperm.slane %v1083, 0
        %1087 = vrot.lane.b32.xlu0 %v1085, 48
        %v1088 = vpop.permute.xlu0 %1087
        %v1090 = vmul.f32 %v367, %v1088
        %v1091 = vmul.f32 %v370, %v1088
        %v1092 = vmul.f32 %v373, %v1088
        %v1093 = vmul.f32 %v376, %v1088
        %v1094 = vmul.f32 %v379, %v1088
        %v1095 = vmul.f32 %v382, %v1088
        %v1096 = vmul.f32 %v385, %v1088
        %v1097 = vmul.f32 %v388, %v1088
        %v1098 = vmul.f32 %v391, %v1088
        %v1099 = vmul.f32 %v394, %v1088
        %v1100 = vmul.f32 %v397, %v1088
        %v1101 = vmul.f32 %v400, %v1088
        %v1102 = vmul.f32 %v403, %v1088
        %v1103 = vmul.f32 %v406, %v1088
        %v1104 = vmul.f32 %v409, %v1088
        %v1105 = vmul.f32 %v412, %v1088
        %1122 = vrot.lane.b32.xlu0 %v1090, 80
        %v1123 = vpop.permute.xlu0 %1122
        %1124 = vrot.lane.b32.xlu0 %v1091, 80
        %v1125 = vpop.permute.xlu0 %1124
        %1126 = vrot.lane.b32.xlu0 %v1092, 80
        %v1127 = vpop.permute.xlu0 %1126
        %1128 = vrot.lane.b32.xlu0 %v1093, 80
        %v1129 = vpop.permute.xlu0 %1128
        %1130 = vrot.lane.b32.xlu0 %v1094, 80
        %v1131 = vpop.permute.xlu0 %1130
        %1132 = vrot.lane.b32.xlu0 %v1095, 80
        %v1133 = vpop.permute.xlu0 %1132
        %1134 = vrot.lane.b32.xlu0 %v1096, 80
        %v1135 = vpop.permute.xlu0 %1134
        %1136 = vrot.lane.b32.xlu0 %v1097, 80
        %v1137 = vpop.permute.xlu0 %1136
        %1138 = vrot.lane.b32.xlu0 %v1098, 80
        %v1139 = vpop.permute.xlu0 %1138
        %1140 = vrot.lane.b32.xlu0 %v1099, 80
        %v1141 = vpop.permute.xlu0 %1140
        %1142 = vrot.lane.b32.xlu0 %v1100, 80
        %v1143 = vpop.permute.xlu0 %1142
        %1144 = vrot.lane.b32.xlu0 %v1101, 80
        %v1145 = vpop.permute.xlu0 %1144
        %1146 = vrot.lane.b32.xlu0 %v1102, 80
        %v1147 = vpop.permute.xlu0 %1146
        %1148 = vrot.lane.b32.xlu0 %v1103, 80
        %v1149 = vpop.permute.xlu0 %1148
        %1150 = vrot.lane.b32.xlu0 %v1104, 80
        %v1151 = vpop.permute.xlu0 %1150
        %1152 = vrot.lane.b32.xlu0 %v1105, 80
        %v1153 = vpop.permute.xlu0 %1152
        %v1170 = vsel %vm433, %v1123, 0.0
        %1171 = vadd.xlane.f32.xlu0 %v1170
        %v1172 = vpop.xlane.xlu0 %1171
        %v1173 = vsel %vm433, %v1125, 0.0
        %1174 = vadd.xlane.f32.xlu0 %v1173
        %v1175 = vpop.xlane.xlu0 %1174
        %v1176 = vsel %vm433, %v1127, 0.0
        %1177 = vadd.xlane.f32.xlu0 %v1176
        %v1178 = vpop.xlane.xlu0 %1177
        %v1179 = vsel %vm433, %v1129, 0.0
        %1180 = vadd.xlane.f32.xlu0 %v1179
        %v1181 = vpop.xlane.xlu0 %1180
        %v1182 = vsel %vm433, %v1131, 0.0
        %1183 = vadd.xlane.f32.xlu0 %v1182
        %v1184 = vpop.xlane.xlu0 %1183
        %v1185 = vsel %vm433, %v1133, 0.0
        %1186 = vadd.xlane.f32.xlu0 %v1185
        %v1187 = vpop.xlane.xlu0 %1186
        %v1188 = vsel %vm433, %v1135, 0.0
        %1189 = vadd.xlane.f32.xlu0 %v1188
        %v1190 = vpop.xlane.xlu0 %1189
        %v1191 = vsel %vm433, %v1137, 0.0
        %1192 = vadd.xlane.f32.xlu0 %v1191
        %v1193 = vpop.xlane.xlu0 %1192
        %v1194 = vsel %vm433, %v1139, 0.0
        %1195 = vadd.xlane.f32.xlu0 %v1194
        %v1196 = vpop.xlane.xlu0 %1195
        %v1197 = vsel %vm433, %v1141, 0.0
        %1198 = vadd.xlane.f32.xlu0 %v1197
        %v1199 = vpop.xlane.xlu0 %1198
        %v1200 = vsel %vm433, %v1143, 0.0
        %1201 = vadd.xlane.f32.xlu0 %v1200
        %v1202 = vpop.xlane.xlu0 %1201
        %v1203 = vsel %vm433, %v1145, 0.0
        %1204 = vadd.xlane.f32.xlu0 %v1203
        %v1205 = vpop.xlane.xlu0 %1204
        %v1206 = vsel %vm433, %v1147, 0.0
        %1207 = vadd.xlane.f32.xlu0 %v1206
        %v1208 = vpop.xlane.xlu0 %1207
        %v1209 = vsel %vm433, %v1149, 0.0
        %1210 = vadd.xlane.f32.xlu0 %v1209
        %v1211 = vpop.xlane.xlu0 %1210
        %v1212 = vsel %vm433, %v1151, 0.0
        %1213 = vadd.xlane.f32.xlu0 %v1212
        %v1214 = vpop.xlane.xlu0 %1213
        %v1215 = vsel %vm433, %v1153, 0.0
        %1216 = vadd.xlane.f32.xlu0 %v1215
        %v1217 = vpop.xlane.xlu0 %1216
        %v1218 = vperm.slane %v1084, 0
        %1220 = vrot.lane.b32.xlu0 %v1218, 48
        %v1221 = vpop.permute.xlu0 %1220
        %v1223 = vmul.f32 %v367, %v1221
        %v1224 = vmul.f32 %v370, %v1221
        %v1225 = vmul.f32 %v373, %v1221
        %v1226 = vmul.f32 %v376, %v1221
        %v1227 = vmul.f32 %v379, %v1221
        %v1228 = vmul.f32 %v382, %v1221
        %v1229 = vmul.f32 %v385, %v1221
        %v1230 = vmul.f32 %v388, %v1221
        %v1231 = vmul.f32 %v391, %v1221
        %v1232 = vmul.f32 %v394, %v1221
        %v1233 = vmul.f32 %v397, %v1221
        %v1234 = vmul.f32 %v400, %v1221
        %v1235 = vmul.f32 %v403, %v1221
        %v1236 = vmul.f32 %v406, %v1221
        %v1237 = vmul.f32 %v409, %v1221
        %v1238 = vmul.f32 %v412, %v1221
        %1255 = vrot.lane.b32.xlu0 %v1223, 80
        %v1256 = vpop.permute.xlu0 %1255
        %1257 = vrot.lane.b32.xlu0 %v1224, 80
        %v1258 = vpop.permute.xlu0 %1257
        %1259 = vrot.lane.b32.xlu0 %v1225, 80
        %v1260 = vpop.permute.xlu0 %1259
        %1261 = vrot.lane.b32.xlu0 %v1226, 80
        %v1262 = vpop.permute.xlu0 %1261
        %1263 = vrot.lane.b32.xlu0 %v1227, 80
        %v1264 = vpop.permute.xlu0 %1263
        %1265 = vrot.lane.b32.xlu0 %v1228, 80
        %v1266 = vpop.permute.xlu0 %1265
        %1267 = vrot.lane.b32.xlu0 %v1229, 80
        %v1268 = vpop.permute.xlu0 %1267
        %1269 = vrot.lane.b32.xlu0 %v1230, 80
        %v1270 = vpop.permute.xlu0 %1269
        %1271 = vrot.lane.b32.xlu0 %v1231, 80
        %v1272 = vpop.permute.xlu0 %1271
        %1273 = vrot.lane.b32.xlu0 %v1232, 80
        %v1274 = vpop.permute.xlu0 %1273
        %1275 = vrot.lane.b32.xlu0 %v1233, 80
        %v1276 = vpop.permute.xlu0 %1275
        %1277 = vrot.lane.b32.xlu0 %v1234, 80
        %v1278 = vpop.permute.xlu0 %1277
        %1279 = vrot.lane.b32.xlu0 %v1235, 80
        %v1280 = vpop.permute.xlu0 %1279
        %1281 = vrot.lane.b32.xlu0 %v1236, 80
        %v1282 = vpop.permute.xlu0 %1281
        %1283 = vrot.lane.b32.xlu0 %v1237, 80
        %v1284 = vpop.permute.xlu0 %1283
        %1285 = vrot.lane.b32.xlu0 %v1238, 80
        %v1286 = vpop.permute.xlu0 %1285
        %v1303 = vsel %vm433, %v1256, 0.0
        %1304 = vadd.xlane.f32.xlu0 %v1303
        %v1305 = vpop.xlane.xlu0 %1304
        %v1306 = vsel %vm433, %v1258, 0.0
        %1307 = vadd.xlane.f32.xlu0 %v1306
        %v1308 = vpop.xlane.xlu0 %1307
        %v1309 = vsel %vm433, %v1260, 0.0
        %1310 = vadd.xlane.f32.xlu0 %v1309
        %v1311 = vpop.xlane.xlu0 %1310
        %v1312 = vsel %vm433, %v1262, 0.0
        %1313 = vadd.xlane.f32.xlu0 %v1312
        %v1314 = vpop.xlane.xlu0 %1313
        %v1315 = vsel %vm433, %v1264, 0.0
        %1316 = vadd.xlane.f32.xlu0 %v1315
        %v1317 = vpop.xlane.xlu0 %1316
        %v1318 = vsel %vm433, %v1266, 0.0
        %1319 = vadd.xlane.f32.xlu0 %v1318
        %v1320 = vpop.xlane.xlu0 %1319
        %v1321 = vsel %vm433, %v1268, 0.0
        %1322 = vadd.xlane.f32.xlu0 %v1321
        %v1323 = vpop.xlane.xlu0 %1322
        %v1324 = vsel %vm433, %v1270, 0.0
        %1325 = vadd.xlane.f32.xlu0 %v1324
        %v1326 = vpop.xlane.xlu0 %1325
        %v1327 = vsel %vm433, %v1272, 0.0
        %1328 = vadd.xlane.f32.xlu0 %v1327
        %v1329 = vpop.xlane.xlu0 %1328
        %v1330 = vsel %vm433, %v1274, 0.0
        %1331 = vadd.xlane.f32.xlu0 %v1330
        %v1332 = vpop.xlane.xlu0 %1331
        %v1333 = vsel %vm433, %v1276, 0.0
        %1334 = vadd.xlane.f32.xlu0 %v1333
        %v1335 = vpop.xlane.xlu0 %1334
        %v1336 = vsel %vm433, %v1278, 0.0
        %1337 = vadd.xlane.f32.xlu0 %v1336
        %v1338 = vpop.xlane.xlu0 %1337
        %v1339 = vsel %vm433, %v1280, 0.0
        %1340 = vadd.xlane.f32.xlu0 %v1339
        %v1341 = vpop.xlane.xlu0 %1340
        %v1342 = vsel %vm433, %v1282, 0.0
        %1343 = vadd.xlane.f32.xlu0 %v1342
        %v1344 = vpop.xlane.xlu0 %1343
        %v1345 = vsel %vm433, %v1284, 0.0
        %1346 = vadd.xlane.f32.xlu0 %v1345
        %v1347 = vpop.xlane.xlu0 %1346
        %v1348 = vsel %vm433, %v1286, 0.0
        %1349 = vadd.xlane.f32.xlu0 %v1348
        %v1350 = vpop.xlane.xlu0 %1349
        %vm1351 = vcmask 7168
        %v1352 = vsel %vm1351, %v436, %v636
        %v1353 = vsel %vm1351, %v439, %v639
        %v1354 = vsel %vm1351, %v442, %v642
        %v1355 = vsel %vm1351, %v445, %v645
        %v1356 = vsel %vm1351, %v448, %v648
        %v1357 = vsel %vm1351, %v451, %v651
        %v1358 = vsel %vm1351, %v454, %v654
        %v1359 = vsel %vm1351, %v457, %v657
        %v1360 = vsel %vm1351, %v460, %v660
        %v1361 = vsel %vm1351, %v463, %v663
        %v1362 = vsel %vm1351, %v466, %v666
        %v1363 = vsel %vm1351, %v469, %v669
        %v1364 = vsel %vm1351, %v472, %v672
        %v1365 = vsel %vm1351, %v475, %v675
        %v1366 = vsel %vm1351, %v478, %v678
        %v1367 = vsel %vm1351, %v481, %v681
        %vm1368 = vcmask 15360
        %v1369 = vsel %vm1368, %v1352, %v904
        %v1370 = vsel %vm1368, %v1353, %v907
        %v1371 = vsel %vm1368, %v1354, %v910
        %v1372 = vsel %vm1368, %v1355, %v913
        %v1373 = vsel %vm1368, %v1356, %v916
        %v1374 = vsel %vm1368, %v1357, %v919
        %v1375 = vsel %vm1368, %v1358, %v922
        %v1376 = vsel %vm1368, %v1359, %v925
        %v1377 = vsel %vm1368, %v1360, %v928
        %v1378 = vsel %vm1368, %v1361, %v931
        %v1379 = vsel %vm1368, %v1362, %v934
        %v1380 = vsel %vm1368, %v1363, %v937
        %v1381 = vsel %vm1368, %v1364, %v940
        %v1382 = vsel %vm1368, %v1365, %v943
        %v1383 = vsel %vm1368, %v1366, %v946
        %v1384 = vsel %vm1368, %v1367, %v949
        %vm1385 = vcmask 23552
        %v1386 = vsel %vm1385, %v1369, %v1172
        %v1387 = vsel %vm1385, %v1370, %v1175
        %v1388 = vsel %vm1385, %v1371, %v1178
        %v1389 = vsel %vm1385, %v1372, %v1181
        %v1390 = vsel %vm1385, %v1373, %v1184
        %v1391 = vsel %vm1385, %v1374, %v1187
        %v1392 = vsel %vm1385, %v1375, %v1190
        %v1393 = vsel %vm1385, %v1376, %v1193
        %v1394 = vsel %vm1385, %v1377, %v1196
        %v1395 = vsel %vm1385, %v1378, %v1199
        %v1396 = vsel %vm1385, %v1379, %v1202
        %v1397 = vsel %vm1385, %v1380, %v1205
        %v1398 = vsel %vm1385, %v1381, %v1208
        %v1399 = vsel %vm1385, %v1382, %v1211
        %v1400 = vsel %vm1385, %v1383, %v1214
        %v1401 = vsel %vm1385, %v1384, %v1217
        %vm1402 = vcmask 31744
        %1403 = vst.msk [vmem:[%s272] sm:$0xff] %vm1402, %v1386
        %1404 = vst.msk [vmem:[%s272 + $0x8] sm:$0xff] %vm1402, %v1387
        %1405 = vst.msk [vmem:[%s272 + $0x10] sm:$0xff] %vm1402, %v1388
        %1406 = vst.msk [vmem:[%s272 + $0x18] sm:$0xff] %vm1402, %v1389
        %1407 = vst.msk [vmem:[%s272 + $0x20] sm:$0xff] %vm1402, %v1390
        %1408 = vst.msk [vmem:[%s272 + $0x28] sm:$0xff] %vm1402, %v1391
        %1409 = vst.msk [vmem:[%s272 + $0x30] sm:$0xff] %vm1402, %v1392
        %1410 = vst.msk [vmem:[%s272 + $0x38] sm:$0xff] %vm1402, %v1393
        %1411 = vst.msk [vmem:[%s272 + $0x40] sm:$0xff] %vm1402, %v1394
        %1412 = vst.msk [vmem:[%s272 + $0x48] sm:$0xff] %vm1402, %v1395
        %1413 = vst.msk [vmem:[%s272 + $0x50] sm:$0xff] %vm1402, %v1396
        %1414 = vst.msk [vmem:[%s272 + $0x58] sm:$0xff] %vm1402, %v1397
        %1415 = vst.msk [vmem:[%s272 + $0x60] sm:$0xff] %vm1402, %v1398
        %1416 = vst.msk [vmem:[%s272 + $0x68] sm:$0xff] %vm1402, %v1399
        %1417 = vst.msk [vmem:[%s272 + $0x70] sm:$0xff] %vm1402, %v1400
        %1418 = vst.msk [vmem:[%s272 + $0x78] sm:$0xff] %vm1402, %v1401
        %v1419 = vsel %vm1351, %v501, %v769
        %v1420 = vsel %vm1351, %v504, %v772
        %v1421 = vsel %vm1351, %v507, %v775
        %v1422 = vsel %vm1351, %v510, %v778
        %v1423 = vsel %vm1351, %v513, %v781
        %v1424 = vsel %vm1351, %v516, %v784
        %v1425 = vsel %vm1351, %v519, %v787
        %v1426 = vsel %vm1351, %v522, %v790
        %v1427 = vsel %vm1351, %v525, %v793
        %v1428 = vsel %vm1351, %v528, %v796
        %v1429 = vsel %vm1351, %v531, %v799
        %v1430 = vsel %vm1351, %v534, %v802
        %v1431 = vsel %vm1351, %v537, %v805
        %v1432 = vsel %vm1351, %v540, %v808
        %v1433 = vsel %vm1351, %v543, %v811
        %v1434 = vsel %vm1351, %v546, %v814
        %v1435 = vsel %vm1368, %v1419, %v1037
        %v1436 = vsel %vm1368, %v1420, %v1040
        %v1437 = vsel %vm1368, %v1421, %v1043
        %v1438 = vsel %vm1368, %v1422, %v1046
        %v1439 = vsel %vm1368, %v1423, %v1049
        %v1440 = vsel %vm1368, %v1424, %v1052
        %v1441 = vsel %vm1368, %v1425, %v1055
        %v1442 = vsel %vm1368, %v1426, %v1058
        %v1443 = vsel %vm1368, %v1427, %v1061
        %v1444 = vsel %vm1368, %v1428, %v1064
        %v1445 = vsel %vm1368, %v1429, %v1067
        %v1446 = vsel %vm1368, %v1430, %v1070
        %v1447 = vsel %vm1368, %v1431, %v1073
        %v1448 = vsel %vm1368, %v1432, %v1076
        %v1449 = vsel %vm1368, %v1433, %v1079
        %v1450 = vsel %vm1368, %v1434, %v1082
        %v1451 = vsel %vm1385, %v1435, %v1305
        %v1452 = vsel %vm1385, %v1436, %v1308
        %v1453 = vsel %vm1385, %v1437, %v1311
        %v1454 = vsel %vm1385, %v1438, %v1314
        %v1455 = vsel %vm1385, %v1439, %v1317
        %v1456 = vsel %vm1385, %v1440, %v1320
        %v1457 = vsel %vm1385, %v1441, %v1323
        %v1458 = vsel %vm1385, %v1442, %v1326
        %v1459 = vsel %vm1385, %v1443, %v1329
        %v1460 = vsel %vm1385, %v1444, %v1332
        %v1461 = vsel %vm1385, %v1445, %v1335
        %v1462 = vsel %vm1385, %v1446, %v1338
        %v1463 = vsel %vm1385, %v1447, %v1341
        %v1464 = vsel %vm1385, %v1448, %v1344
        %v1465 = vsel %vm1385, %v1449, %v1347
        %v1466 = vsel %vm1385, %v1450, %v1350
        %1467 = vst.msk [vmem:[%s278] sm:$0xff] %vm1402, %v1451
        %1468 = vst.msk [vmem:[%s278 + $0x8] sm:$0xff] %vm1402, %v1452
        %1469 = vst.msk [vmem:[%s278 + $0x10] sm:$0xff] %vm1402, %v1453
        %1470 = vst.msk [vmem:[%s278 + $0x18] sm:$0xff] %vm1402, %v1454
        %1471 = vst.msk [vmem:[%s278 + $0x20] sm:$0xff] %vm1402, %v1455
        %1472 = vst.msk [vmem:[%s278 + $0x28] sm:$0xff] %vm1402, %v1456
        %1473 = vst.msk [vmem:[%s278 + $0x30] sm:$0xff] %vm1402, %v1457
        %1474 = vst.msk [vmem:[%s278 + $0x38] sm:$0xff] %vm1402, %v1458
        %1475 = vst.msk [vmem:[%s278 + $0x40] sm:$0xff] %vm1402, %v1459
        %1476 = vst.msk [vmem:[%s278 + $0x48] sm:$0xff] %vm1402, %v1460
        %1477 = vst.msk [vmem:[%s278 + $0x50] sm:$0xff] %vm1402, %v1461
        %1478 = vst.msk [vmem:[%s278 + $0x58] sm:$0xff] %vm1402, %v1462
        %1479 = vst.msk [vmem:[%s278 + $0x60] sm:$0xff] %vm1402, %v1463
        %1480 = vst.msk [vmem:[%s278 + $0x68] sm:$0xff] %vm1402, %v1464
        %1481 = vst.msk [vmem:[%s278 + $0x70] sm:$0xff] %vm1402, %v1465
        %1482 = vst.msk [vmem:[%s278 + $0x78] sm:$0xff] %vm1402, %v1466
        %v1483 = vpack.c.bf16 %v367, %v367
        %v1484 = vpack.c.bf16 %v370, %v370
        %v1485 = vpack.c.bf16 %v373, %v373
        %v1486 = vpack.c.bf16 %v376, %v376
        %v1487 = vpack.c.bf16 %v379, %v379
        %v1488 = vpack.c.bf16 %v382, %v382
        %v1489 = vpack.c.bf16 %v385, %v385
        %v1490 = vpack.c.bf16 %v388, %v388
        %v1491 = vpack.c.bf16 %v391, %v391
        %v1492 = vpack.c.bf16 %v394, %v394
        %v1493 = vpack.c.bf16 %v397, %v397
        %v1494 = vpack.c.bf16 %v400, %v400
        %v1495 = vpack.c.bf16 %v403, %v403
        %v1496 = vpack.c.bf16 %v406, %v406
        %v1497 = vpack.c.bf16 %v409, %v409
        %v1498 = vpack.c.bf16 %v412, %v412
        %1499 = vst [vmem:[%s246] sm:$0xf] %v1483
        %1500 = vst [vmem:[%s246 + $0x4] sm:$0xf] %v1484
        %1501 = vst [vmem:[%s246 + $0x8] sm:$0xf] %v1485
        %1502 = vst [vmem:[%s246 + $0xc] sm:$0xf] %v1486
        %1503 = vst [vmem:[%s246 + $0x10] sm:$0xf] %v1487
        %1504 = vst [vmem:[%s246 + $0x14] sm:$0xf] %v1488
        %1505 = vst [vmem:[%s246 + $0x18] sm:$0xf] %v1489
        %1506 = vst [vmem:[%s246 + $0x1c] sm:$0xf] %v1490
        %1507 = vst [vmem:[%s246 + $0x20] sm:$0xf] %v1491
        %1508 = vst [vmem:[%s246 + $0x24] sm:$0xf] %v1492
        %1509 = vst [vmem:[%s246 + $0x28] sm:$0xf] %v1493
        %1510 = vst [vmem:[%s246 + $0x2c] sm:$0xf] %v1494
        %1511 = vst [vmem:[%s246 + $0x30] sm:$0xf] %v1495
        %1512 = vst [vmem:[%s246 + $0x34] sm:$0xf] %v1496
        %1513 = vst [vmem:[%s246 + $0x38] sm:$0xf] %v1497
        %1514 = vst [vmem:[%s246 + $0x3c] sm:$0xf] %v1498
        %s1515 = sand.u32 %s118, 1
        %s1516 = scalar_lea.sflag [#allocation3], %s1515
        %s1517 = sand.u32 %s118, 1
        %s1518 = smul.addr %s1517, 64
        %s1519 = scalar_lea.vmem [#allocation2], %s1518
        %s1520 = smul.u32 16, %s21
        %p1521 = scmp.lt.s32.totalorder %s1520, 31
        %s1522 = scalar_select %p1521, %s1520, 31
        %s1523 = smul.addr %s1522, 8
        %s1524 = scalar_lea.vmem %s5, %s1523
        %s1525 = smul.u32 16, %s21
        %p1526 = scmp.lt.s32.totalorder %s1525, 31
        %s1527 = scalar_select %p1526, %s1525, 31
        %s1528 = smul.addr %s1527, 8
        %s1529 = scalar_lea.vmem %s6, %s1528
        // Predicated region
        $region37: #{tpu_custom_call.1} parent=35 // pred_check
          %p1530 = pneg %p128
        $region38: #{tpu_custom_call.1} parent=35 // pred_check_branch
          %1532 = sbr.rel (%p1530) target = $region40
        $region39: #{tpu_custom_call.1} parent=35 // pred_region
          %s1533 = smul.u32 16, %s21
          %1535 = vsyncadd %s1516, 0
          %s1536 = smul.addr %s1533, 4
          %s1537 = scalar_lea.hbm %s4, %s1536
          %s1538 = sshll.u32 %s1519, 4
          %s1539 = int_to_ptr.vmem [resolvable:$true] %s1538
          %s1540 = sshll.u32 %s1537, 4
          %s1541 = int_to_ptr.hbm [resolvable:$true] %s1540
          %1546 = dma.vmem_to_hbm [thread:$0]  %s1539, 1024, %s1541, %s1516, 64, 64, 4
        $region40: #{tpu_custom_call.1} parent=35 // pred_fallthru
          _
        // Predicated region
        $region41: #{tpu_custom_call.1} parent=35 // pred_check
          %p1547 = pneg %p154
        $region42: #{tpu_custom_call.1} parent=35 // pred_check_branch
          %1549 = sbr.rel (%p1547) target = $region44
        $region43: #{tpu_custom_call.1} parent=35 // pred_region
          %s1550 = smul.u32 16, %s21
        $region44: #{tpu_custom_call.1} parent=35 // pred_fallthru
          _
        // Predicated region
        $region45: #{tpu_custom_call.1} parent=35 // pred_check
          %p1551 = pneg %p180
        $region46: #{tpu_custom_call.1} parent=35 // pred_check_branch
          %1553 = sbr.rel (%p1551) target = $region48
        $region47: #{tpu_custom_call.1} parent=35 // pred_region
          %s1554 = smul.u32 16, %s21
        $region48: #{tpu_custom_call.1} parent=35 // pred_fallthru
          _
      $region36: #{tpu_custom_call.1} parent=5 // pred_fallthru
        _
      %p1555 = scmp.le.s32.totalorder 2, %s16
      // Predicated region
      $region49: #{tpu_custom_call.1} parent=5 // pred_check
        %p1556 = pneg %p1555
      $region50: #{tpu_custom_call.1} parent=5 // pred_check_branch
        %1558 = sbr.rel (%p1556) target = $region52
      $region51: #{tpu_custom_call.1} parent=5 // pred_region
        %s1559 = ssub.s32 %s16, 2
        // Predicated region
        $region53: #{tpu_custom_call.1} parent=51 // pred_check
          %p1560 = pneg %p134
        $region54: #{tpu_custom_call.1} parent=51 // pred_check_branch
          %1562 = sbr.rel (%p1560) target = $region56
        $region55: #{tpu_custom_call.1} parent=51 // pred_region
          %s1563 = sand.u32 %s119, 1
          %s1564 = scalar_lea.sflag [#allocation3], %s1563
          %s1565 = sand.u32 %s119, 1
          %s1566 = smul.addr %s1565, 64
          %s1567 = scalar_lea.vmem [#allocation2], %s1566
          %1569 = dma.done %s1564, 1024
        $region56: #{tpu_custom_call.1} parent=51 // pred_fallthru
          _
        // Predicated region
        $region57: #{tpu_custom_call.1} parent=51 // pred_check
          %p1570 = pneg %p160
        $region58: #{tpu_custom_call.1} parent=51 // pred_check_branch
          %1572 = sbr.rel (%p1570) target = $region60
        $region59: #{tpu_custom_call.1} parent=51 // pred_region
          %s1573 = smul.u32 16, %s22
          %p1574 = scmp.lt.s32.totalorder %s1573, 31
          %s1575 = scalar_select %p1574, %s1573, 31
          %s1576 = smul.addr %s1575, 8
          %s1577 = scalar_lea.vmem %s5, %s1576
        $region60: #{tpu_custom_call.1} parent=51 // pred_fallthru
          _
        // Predicated region
        $region61: #{tpu_custom_call.1} parent=51 // pred_check
          %p1578 = pneg %p186
        $region62: #{tpu_custom_call.1} parent=51 // pred_check_branch
          %1580 = sbr.rel (%p1578) target = $region64
        $region63: #{tpu_custom_call.1} parent=51 // pred_region
          %s1581 = smul.u32 16, %s22
          %p1582 = scmp.lt.s32.totalorder %s1581, 31
          %s1583 = scalar_select %p1582, %s1581, 31
          %s1584 = smul.addr %s1583, 8
          %s1585 = scalar_lea.vmem %s6, %s1584
        $region64: #{tpu_custom_call.1} parent=51 // pred_fallthru
          _
      $region52: #{tpu_custom_call.1} parent=5 // pred_fallthru
        _
    $region6: #{tpu_custom_call.1} parent=1 // loop_footer
      %s20 = sadd.s32 1, %s16
    $region7: #{tpu_custom_call.1} parent=1 // loop_footer_branch
      %15 = sbr.rel target = $region3
    $region8: #{tpu_custom_call.1} parent=1 // loop_exit
      _
    %1586 = vsyncpa [#allocation3], 1
    %s1587 = scalar_lea.sflag [#allocation3], 1
    %1588 = vsyncpa %s1587, 1

</llo_original>
